<compile_context>
chip_gen: v7x
topology: tpu7x:2x2x1
jax: 0.10.0
libtpu: 0.0.40
codegen_flags: <defaults>
</compile_context>

<pallas_src>
import functools

import jax
import jax.numpy as jnp
from jax.experimental import pallas as pl
from jax.experimental.pallas import tpu as pltpu

# ------------------------- synthetic config -------------------------
BATCH = 8
IMG_H = IMG_W = 16
IN_CH = 1                          # config.model.grayscale = True
CONV_OUT_CH = 64
CONV_CH_PAD = 128                  # lane-dense conv channel dim
KH = KW = 7
STRIDE = 2
PAD = 3
H_OUT = (IMG_H + 2 * PAD - KH) // STRIDE + 1     # 8
W_OUT = (IMG_W + 2 * PAD - KW) // STRIDE + 1     # 8
N_PATCH = H_OUT * W_OUT                          # 64 output positions / image
K2 = KH * KW * IN_CH                             # 49 patch features
FEATURE_DIM = CONV_OUT_CH                        # backbone stand-in feature dim
HIDDEN1 = 512
HIDDEN2 = 256
NUM_CLASSES = 7                                  # config.dataset.num_classes
OUT_PAD = 128                                    # lane-dense classifier output
BN_EPS = 1e-5


def _vmem():
    return pl.BlockSpec(memory_space=pltpu.MemorySpace.VMEM)


# ------------------------- fused Pallas kernel -------------------------
def _fused_forward_kernel(patches_ref, wc_ref, w1_ref, b1_ref, b2_ref, b3_ref,
                          w2_hbm, w3_hbm, out_ref,
                          w2_vmem, w3_vmem, dma_sems, *, batch):
    """conv1 (im2col matmul) + ReLU + GAP + (Linear+BN+ReLU)x2 + classifier."""
    # Kick off the big FC-weight DMAs immediately; they overlap the conv work.
    w2_cp = pltpu.make_async_copy(w2_hbm, w2_vmem, dma_sems.at[0])
    w3_cp = pltpu.make_async_copy(w3_hbm, w3_vmem, dma_sems.at[1])
    w2_cp.start()
    w3_cp.start()

    # conv1 as one MXU matmul: [B*P, K2] @ [K2, 128] -> [B*P, 128]
    # (columns 64..127 of wc are zero, so the extra lanes stay exactly zero)
    conv = jnp.dot(patches_ref[...], wc_ref[...],
                   preferred_element_type=jnp.float32)
    conv = jnp.maximum(conv, 0.0)

    # global average pool: reshape to [B, P, C], reduce over P.
    # The 1/N_PATCH scale is folded into w1 at prepare_params time.
    feats = jnp.sum(conv.reshape(batch, N_PATCH, CONV_CH_PAD), axis=1)  # [B,128]

    # feature_extractor (BN folded into weights/biases, Dropout = identity)
    h1 = jnp.dot(feats, w1_ref[...], preferred_element_type=jnp.float32)
    h1 = jnp.maximum(h1 + b1_ref[...], 0.0)                      # [B, 512]

    w2_cp.wait()
    h2 = jnp.dot(h1, w2_vmem[...], preferred_element_type=jnp.float32)
    h2 = jnp.maximum(h2 + b2_ref[...], 0.0)                      # [B, 256]

    # classifier_head (lane-dense: 128 output columns, extras are zero)
    w3_cp.wait()
    out_ref[...] = (jnp.dot(h2, w3_vmem[...],
                            preferred_element_type=jnp.float32)
                    + b3_ref[...])                               # [B, 128]


# ------------------------- parameter preparation (once) -------------------------
def prepare_params(params):
    """Fold BN + GAP scale into the Linears, pad to lane-dense widths."""
    def fold(w, b, g, beta, m, v):
        s = g / jnp.sqrt(v + BN_EPS)
        return w * s[None, :], ((b - m) * s + beta)[None, :]

    w1f, b1f = fold(params["fc1_w"], params["fc1_b"],
                    params["bn1_g"], params["bn1_b"],
                    params["bn1_m"], params["bn1_v"])
    w2f, b2f = fold(params["fc2_w"], params["fc2_b"],
                    params["bn2_g"], params["bn2_b"],
                    params["bn2_m"], params["bn2_v"])

    # PyTorch conv weight [O, I, KH, KW] -> matmul matrix [(cin,kh,kw), O],
    # zero-padded to 128 lane-dense output channels.
    wc = params["conv_w"].reshape(CONV_OUT_CH, K2).T.astype(jnp.float32)
    wc_p = jnp.zeros((K2, CONV_CH_PAD), jnp.float32)
    wc_p = wc_p.at[:, :CONV_OUT_CH].set(wc)

    # w1: fold the 1/N_PATCH GAP scale and pad input rows 64 -> 128 with zeros
    # (the padded conv channels are exactly zero, so this is exact).
    w1_scaled = w1f.astype(jnp.float32) * (1.0 / N_PATCH)
    w1_p = jnp.zeros((CONV_CH_PAD, HIDDEN1), jnp.float32)
    w1_p = w1_p.at[:CONV_OUT_CH, :].set(w1_scaled)

    # classifier weights padded to a lane-dense 128-wide output.
    w3_p = jnp.zeros((HIDDEN2, OUT_PAD), jnp.float32)
    w3_p = w3_p.at[:, :NUM_CLASSES].set(params["fc3_w"])
    b3_p = jnp.zeros((1, OUT_PAD), jnp.float32)
    b3_p = b3_p.at[0, :NUM_CLASSES].set(params["fc3_b"])

    return {"wc": wc_p,
            "w1": w1_p, "b1": b1f.astype(jnp.float32),
            "w2": w2f.astype(jnp.float32), "b2": b2f.astype(jnp.float32),
            "w3": w3_p, "b3": b3_p}


# ------------------------- forward wrapper (jitted) -------------------------
@jax.jit
def model_forward(image_nchw, kparams):
    B = image_nchw.shape[0]

    # NCHW with C=1 -> NHWC is a pure reshape (no data movement). Extracting
    # patches with NHWC dimension numbers puts K2 last, so the collapse to
    # [B*P, K2] is also a pure reshape: no standalone transpose HLO remains.
    img_nhwc = image_nchw.astype(jnp.float32).reshape(B, IMG_H, IMG_W, IN_CH)
    patches = jax.lax.conv_general_dilated_patches(
        img_nhwc,
        filter_shape=(KH, KW),
        window_strides=(STRIDE, STRIDE),
        padding=((PAD, PAD), (PAD, PAD)),
        dimension_numbers=("NHWC", "HWIO", "NHWC"))          # [B, Ho, Wo, K2]
    patches = patches.reshape(B * N_PATCH, K2)               # [B*P, K2]

    kernel = functools.partial(_fused_forward_kernel, batch=B)
    logits_padded = pl.pallas_call(
        kernel,
        out_shape=jax.ShapeDtypeStruct((B, OUT_PAD), jnp.float32),
        in_specs=[_vmem(), _vmem(), _vmem(), _vmem(), _vmem(), _vmem(),
                  pl.BlockSpec(memory_space=pl.ANY),     # w2 stays in HBM
                  pl.BlockSpec(memory_space=pl.ANY)],    # w3 stays in HBM
        out_specs=_vmem(),
        scratch_shapes=[pltpu.VMEM((HIDDEN1, HIDDEN2), jnp.float32),
                        pltpu.VMEM((HIDDEN2, OUT_PAD), jnp.float32),
                        pltpu.SemaphoreType.DMA((2,))],
    )(patches, kparams["wc"],
      kparams["w1"], kparams["b1"],
      kparams["b2"], kparams["b3"],
      kparams["w2"], kparams["w3"])

    return logits_padded[:, :NUM_CLASSES]


# ------------------------- pure-JAX reference -------------------------
def reference_forward(batch, params):
    x = batch["image"]
    conv = jax.lax.conv_general_dilated(
        x, params["conv_w"], window_strides=(STRIDE, STRIDE),
        padding=((PAD, PAD), (PAD, PAD)),
        dimension_numbers=("NCHW", "OIHW", "NCHW"))
    conv = jnp.maximum(conv, 0.0)
    feats = conv.mean(axis=(2, 3))                            # [B, 64]

    def lin_bn_relu(h, w, b, g, beta, m, v):
        y = h @ w + b
        y = (y - m) / jnp.sqrt(v + BN_EPS) * g + beta
        return jnp.maximum(y, 0.0)

    h1 = lin_bn_relu(feats, params["fc1_w"], params["fc1_b"],
                     params["bn1_g"], params["bn1_b"],
                     params["bn1_m"], params["bn1_v"])
    h2 = lin_bn_relu(h1, params["fc2_w"], params["fc2_b"],
                     params["bn2_g"], params["bn2_b"],
                     params["bn2_m"], params["bn2_v"])
    return h2 @ params["fc3_w"] + params["fc3_b"]


# ------------------------- parameter init -------------------------
def init_params(key):
    ks = jax.random.split(key, 12)
    return {
        "conv_w": 0.05 * jax.random.normal(ks[0], (CONV_OUT_CH, IN_CH, KH, KW),
                                           jnp.float32),
        "fc1_w": 0.05 * jax.random.normal(ks[1], (FEATURE_DIM, HIDDEN1),
                                          jnp.float32),
        "fc1_b": 0.05 * jax.random.normal(ks[2], (HIDDEN1,), jnp.float32),
        "bn1_g": 1.0 + 0.1 * jax.random.normal(ks[3], (HIDDEN1,), jnp.float32),
        "bn1_b": 0.1 * jax.random.normal(ks[4], (HIDDEN1,), jnp.float32),
        "bn1_m": 0.1 * jax.random.normal(ks[5], (HIDDEN1,), jnp.float32),
        "bn1_v": 1.0 + 0.1 * jax.random.uniform(ks[6], (HIDDEN1,), jnp.float32),
        "fc2_w": 0.05 * jax.random.normal(ks[7], (HIDDEN1, HIDDEN2),
                                          jnp.float32),
        "fc2_b": 0.05 * jax.random.normal(ks[8], (HIDDEN2,), jnp.float32),
        "bn2_g": 1.0 + 0.1 * jax.random.normal(ks[9], (HIDDEN2,), jnp.float32),
        "bn2_b": 0.1 * jax.random.normal(ks[10], (HIDDEN2,), jnp.float32),
        "bn2_m": jnp.zeros((HIDDEN2,), jnp.float32),
        "bn2_v": jnp.ones((HIDDEN2,), jnp.float32),
        "fc3_w": 0.05 * jax.random.normal(ks[11], (HIDDEN2, NUM_CLASSES),
                                          jnp.float32),
        "fc3_b": jnp.linspace(-0.1, 0.1, NUM_CLASSES, dtype=jnp.float32),
    }


if __name__ == "__main__":
    key = jax.random.PRNGKey(0)
    k_img, k_par = jax.random.split(key)
    image = jax.random.normal(k_img, (BATCH, IN_CH, IMG_H, IMG_W), jnp.float32)
    params = init_params(k_par)
    batch = {"image": image}

    kparams = prepare_params(params)            # BN/GAP fold + padding, once
    logits = jax.block_until_ready(model_forward(image, kparams))
    ref = jax.block_until_ready(reference_forward(batch, params))

    assert logits.shape == (BATCH, NUM_CLASSES), logits.shape
    assert jnp.allclose(logits, ref, atol=1e-4, rtol=1e-4), (
        f"max abs diff {jnp.max(jnp.abs(logits - ref))}")
    print("KERNEL_OK")
</pallas_src>

<mosaic_0001>
module attributes {stable_mosaic.version = 11 : i64} {
  func.func @_fused_forward_kernel(%arg0: memref<512x49xf32, #tpu.memory_space<vmem>>, %arg1: memref<49x128xf32, #tpu.memory_space<vmem>>, %arg2: memref<128x512xf32, #tpu.memory_space<vmem>>, %arg3: memref<1x512xf32, #tpu.memory_space<vmem>>, %arg4: memref<1x256xf32, #tpu.memory_space<vmem>>, %arg5: memref<1x128xf32, #tpu.memory_space<vmem>>, %arg6: memref<512x256xf32, #tpu.memory_space<any>>, %arg7: memref<256x128xf32, #tpu.memory_space<any>>, %arg8: memref<8x128xf32, #tpu.memory_space<vmem>>, %arg9: memref<512x256xf32, #tpu.memory_space<vmem>>, %arg10: memref<256x128xf32, #tpu.memory_space<vmem>>, %arg11: memref<2x!tpu.dma_semaphore, #tpu.memory_space<semaphore_mem>>) attributes {dimension_semantics = [], scalar_prefetch = 0 : i64, scratch_operands = 3 : i64, tpu.core_type = #tpu.core_type<tc>} {
    %c0_i32 = arith.constant 0 : i32
    %0 = tpu.memref_slice %arg11[%c0_i32] : memref<2x!tpu.dma_semaphore, #tpu.memory_space<semaphore_mem>> -> memref<1x!tpu.dma_semaphore, #tpu.memory_space<semaphore_mem>>
    %1 = tpu.memref_squeeze %0 : memref<1x!tpu.dma_semaphore, #tpu.memory_space<semaphore_mem>> -> memref<!tpu.dma_semaphore, #tpu.memory_space<semaphore_mem>>
    tpu.enqueue_dma source(%arg6 : memref<512x256xf32, #tpu.memory_space<any>>) target(%arg9 : memref<512x256xf32, #tpu.memory_space<vmem>>) target_semaphore(%1 : memref<!tpu.dma_semaphore, #tpu.memory_space<semaphore_mem>>)
    %c1_i32 = arith.constant 1 : i32
    %2 = tpu.memref_slice %arg11[%c1_i32] : memref<2x!tpu.dma_semaphore, #tpu.memory_space<semaphore_mem>> -> memref<1x!tpu.dma_semaphore, #tpu.memory_space<semaphore_mem>>
    %3 = tpu.memref_squeeze %2 : memref<1x!tpu.dma_semaphore, #tpu.memory_space<semaphore_mem>> -> memref<!tpu.dma_semaphore, #tpu.memory_space<semaphore_mem>>
    tpu.enqueue_dma source(%arg7 : memref<256x128xf32, #tpu.memory_space<any>>) target(%arg10 : memref<256x128xf32, #tpu.memory_space<vmem>>) target_semaphore(%3 : memref<!tpu.dma_semaphore, #tpu.memory_space<semaphore_mem>>)
    %c0 = arith.constant 0 : index
    %c0_0 = arith.constant 0 : index
    %4 = vector.load %arg0[%c0, %c0_0] : memref<512x49xf32, #tpu.memory_space<vmem>>, vector<512x49xf32>
    %c0_1 = arith.constant 0 : index
    %c0_2 = arith.constant 0 : index
    %5 = vector.load %arg1[%c0_1, %c0_2] : memref<49x128xf32, #tpu.memory_space<vmem>>, vector<49x128xf32>
    %cst = arith.constant dense<0.000000e+00> : vector<512x128xf32>
    %6 = tpu.matmul %4, %5, %cst {dimension_numbers = #tpu.dot_dimension_numbers<[1], [0], [0], [1], [0, 0, 1, 1], [], []>} : vector<512x49xf32>, vector<49x128xf32>, vector<512x128xf32> -> vector<512x128xf32>
    %cst_3 = arith.constant 0.000000e+00 : f32
    %7 = vector.broadcast %cst_3 : f32 to vector<512x128xf32>
    %8 = arith.maximumf %6, %7 : vector<512x128xf32>
    %9 = vector.shape_cast %8 : vector<512x128xf32> to vector<8x64x128xf32>
    %cst_4 = arith.constant dense<0.000000e+00> : vector<8x128xf32>
    %10 = vector.multi_reduction <add>, %9, %cst_4 [1] : vector<8x64x128xf32> to vector<8x128xf32>
    %c0_5 = arith.constant 0 : index
    %c0_6 = arith.constant 0 : index
    %11 = vector.load %arg2[%c0_5, %c0_6] : memref<128x512xf32, #tpu.memory_space<vmem>>, vector<128x512xf32>
    %cst_7 = arith.constant dense<0.000000e+00> : vector<8x512xf32>
    %12 = tpu.matmul %10, %11, %cst_7 {dimension_numbers = #tpu.dot_dimension_numbers<[1], [0], [0], [1], [0, 0, 1, 1], [], []>} : vector<8x128xf32>, vector<128x512xf32>, vector<8x512xf32> -> vector<8x512xf32>
    %c0_8 = arith.constant 0 : index
    %c0_9 = arith.constant 0 : index
    %13 = vector.load %arg3[%c0_8, %c0_9] : memref<1x512xf32, #tpu.memory_space<vmem>>, vector<1x512xf32>
    %14 = vector.broadcast %13 : vector<1x512xf32> to vector<8x512xf32>
    %15 = arith.addf %12, %14 : vector<8x512xf32>
    %cst_10 = arith.constant 0.000000e+00 : f32
    %16 = vector.broadcast %cst_10 : f32 to vector<8x512xf32>
    %17 = arith.maximumf %15, %16 : vector<8x512xf32>
    %c0_i32_11 = arith.constant 0 : i32
    %18 = tpu.memref_slice %arg11[%c0_i32_11] : memref<2x!tpu.dma_semaphore, #tpu.memory_space<semaphore_mem>> -> memref<1x!tpu.dma_semaphore, #tpu.memory_space<semaphore_mem>>
    %19 = tpu.memref_squeeze %18 : memref<1x!tpu.dma_semaphore, #tpu.memory_space<semaphore_mem>> -> memref<!tpu.dma_semaphore, #tpu.memory_space<semaphore_mem>>
    tpu.wait_dma2 semaphore(%19 : memref<!tpu.dma_semaphore, #tpu.memory_space<semaphore_mem>>) src(%arg6 : memref<512x256xf32, #tpu.memory_space<any>>) dst(%arg9 : memref<512x256xf32, #tpu.memory_space<vmem>>)
    %c0_12 = arith.constant 0 : index
    %c0_13 = arith.constant 0 : index
    %20 = vector.load %arg9[%c0_12, %c0_13] : memref<512x256xf32, #tpu.memory_space<vmem>>, vector<512x256xf32>
    %cst_14 = arith.constant dense<0.000000e+00> : vector<8x256xf32>
    %21 = tpu.matmul %17, %20, %cst_14 {dimension_numbers = #tpu.dot_dimension_numbers<[1], [0], [0], [1], [0, 0, 1, 1], [], []>} : vector<8x512xf32>, vector<512x256xf32>, vector<8x256xf32> -> vector<8x256xf32>
    %c0_15 = arith.constant 0 : index
    %c0_16 = arith.constant 0 : index
    %22 = vector.load %arg4[%c0_15, %c0_16] : memref<1x256xf32, #tpu.memory_space<vmem>>, vector<1x256xf32>
    %23 = vector.broadcast %22 : vector<1x256xf32> to vector<8x256xf32>
    %24 = arith.addf %21, %23 : vector<8x256xf32>
    %cst_17 = arith.constant 0.000000e+00 : f32
    %25 = vector.broadcast %cst_17 : f32 to vector<8x256xf32>
    %26 = arith.maximumf %24, %25 : vector<8x256xf32>
    %c1_i32_18 = arith.constant 1 : i32
    %27 = tpu.memref_slice %arg11[%c1_i32_18] : memref<2x!tpu.dma_semaphore, #tpu.memory_space<semaphore_mem>> -> memref<1x!tpu.dma_semaphore, #tpu.memory_space<semaphore_mem>>
    %28 = tpu.memref_squeeze %27 : memref<1x!tpu.dma_semaphore, #tpu.memory_space<semaphore_mem>> -> memref<!tpu.dma_semaphore, #tpu.memory_space<semaphore_mem>>
    tpu.wait_dma2 semaphore(%28 : memref<!tpu.dma_semaphore, #tpu.memory_space<semaphore_mem>>) src(%arg7 : memref<256x128xf32, #tpu.memory_space<any>>) dst(%arg10 : memref<256x128xf32, #tpu.memory_space<vmem>>)
    %c0_19 = arith.constant 0 : index
    %c0_20 = arith.constant 0 : index
    %29 = vector.load %arg10[%c0_19, %c0_20] : memref<256x128xf32, #tpu.memory_space<vmem>>, vector<256x128xf32>
    %cst_21 = arith.constant dense<0.000000e+00> : vector<8x128xf32>
    %30 = tpu.matmul %26, %29, %cst_21 {dimension_numbers = #tpu.dot_dimension_numbers<[1], [0], [0], [1], [0, 0, 1, 1], [], []>} : vector<8x256xf32>, vector<256x128xf32>, vector<8x128xf32> -> vector<8x128xf32>
    %c0_22 = arith.constant 0 : index
    %c0_23 = arith.constant 0 : index
    %31 = vector.load %arg5[%c0_22, %c0_23] : memref<1x128xf32, #tpu.memory_space<vmem>>, vector<1x128xf32>
    %32 = vector.broadcast %31 : vector<1x128xf32> to vector<8x128xf32>
    %33 = arith.addf %30, %32 : vector<8x128xf32>
    %c0_24 = arith.constant 0 : index
    %c0_25 = arith.constant 0 : index
    %34 = vector.load %arg8[%c0_24, %c0_25] : memref<8x128xf32, #tpu.memory_space<vmem>>, vector<8x128xf32>
    tpu.vector_store %arg8[%c0_24, %c0_25], %33 {strides = array<i32>} : memref<8x128xf32, #tpu.memory_space<vmem>>, vector<8x128xf32>,
    return
  }
}

</mosaic_0001>

<llo_original>
// kernel: model_forward.1
$region0: #{model_forward.1}
  #allocation0 [shape = 'u32[]', space=smem, size = 0x4, offset = 0x4, fixed_abs, tag = 'smem constant byte address 0x4 - core index']
  #allocation1 [shape = 'u32[144,128]{1,0:T(1,128)}', space=vmem, size = 0x12000, scoped, tag = 'internal scratch']
  #allocation2 [shape = 'f32[512,256]{1,0:T(8,128)}', space=vmem, size = 0x80000, scoped, tag = 'scratch operand']
  #allocation3 [shape = 'f32[256,128]{1,0:T(8,128)}', space=vmem, size = 0x20000, scoped, tag = 'scratch operand']
  #allocation4 [shape = 's32[2]{0}', space=sflag, size = 0x8, scoped, tag = 'scratch operand']
  #allocation7 [shape = 's32[]', space=sflag, size = 0x4, offset = 0, fixed_abs, tag = 'sflag constant byte address 0x0 - dummy sync flag']
  #allocation8 [shape = 's32[]', space=sflag, size = 0x4, offset = 0, fixed_abs, tag = 'sflag constant byte address 0x0 - dummy sync flag']
  %s0 = inlined_call_operand.vmem [shape: f32[512,49], index: 0, kind: input, shape index: {}]
  %s1 = inlined_call_operand.vmem [shape: f32[49,128], index: 1, kind: input, shape index: {}]
  %s2 = inlined_call_operand.vmem [shape: f32[128,512], index: 2, kind: input, shape index: {}]
  %s3 = inlined_call_operand.vmem [shape: f32[1,512], index: 3, kind: input, shape index: {}]
  %s4 = inlined_call_operand.vmem [shape: f32[1,256], index: 4, kind: input, shape index: {}]
  %s5 = inlined_call_operand.vmem [shape: f32[1,128], index: 5, kind: input, shape index: {}]
  %s6 = inlined_call_operand.vmem [shape: f32[512,256], index: 6, kind: input, shape index: {}]
  %s7 = inlined_call_operand.vmem [shape: f32[256,128], index: 7, kind: input, shape index: {}]
  %s8 = inlined_call_operand.hbm [shape: f32[8,128], index: 8, kind: output, shape index: {}]
  %s9 = sld [smem:[#allocation0]]
  $region102: #{model_forward.1} parent=0
    _
  %s11 = ssub.s32 1, %s9
  %s12 = scalar_select 0, %s11, %s9
  $region1: #{model_forward.1} parent=0
    #allocation5 [shape = 'u8[4096]{0}', space=vmem, size = 0x1000, scoped, tag = 'output window, operand 0, single buffered']
    #allocation6 [shape = 's32[1]{0}', space=sflag, size = 0x4, scoped, tag = 'scoped memory for model_forward.1']
    %13 = vsyncpa [#allocation6], 0
    // Predicated region
    $region2: #{model_forward.1} parent=1 // pred_check
      _
    $region3: #{model_forward.1} parent=1 // pred_check_branch
      %15 = sbr.rel (0) target = $region5
    $region4: #{model_forward.1} parent=1 // pred_region
      _
    $region5: #{model_forward.1} parent=1 // pred_fallthru
      _
    // Predicated region
    $region6: #{model_forward.1} parent=1 // pred_check
      _
    $region7: #{model_forward.1} parent=1 // pred_check_branch
      %17 = sbr.rel (0) target = $region9
    $region8: #{model_forward.1} parent=1 // pred_region
      _
    $region9: #{model_forward.1} parent=1 // pred_fallthru
      _
    // Predicated region
    $region10: #{model_forward.1} parent=1 // pred_check
      _
    $region11: #{model_forward.1} parent=1 // pred_check_branch
      %19 = sbr.rel (0) target = $region13
    $region12: #{model_forward.1} parent=1 // pred_region
      _
    $region13: #{model_forward.1} parent=1 // pred_fallthru
      _
    // Predicated region
    $region14: #{model_forward.1} parent=1 // pred_check
      _
    $region15: #{model_forward.1} parent=1 // pred_check_branch
      %21 = sbr.rel (0) target = $region17
    $region16: #{model_forward.1} parent=1 // pred_region
      _
    $region17: #{model_forward.1} parent=1 // pred_fallthru
      _
    // Predicated region
    $region18: #{model_forward.1} parent=1 // pred_check
      _
    $region19: #{model_forward.1} parent=1 // pred_check_branch
      %23 = sbr.rel (0) target = $region21
    $region20: #{model_forward.1} parent=1 // pred_region
      _
    $region21: #{model_forward.1} parent=1 // pred_fallthru
      _
    // Predicated region
    $region22: #{model_forward.1} parent=1 // pred_check
      _
    $region23: #{model_forward.1} parent=1 // pred_check_branch
      %25 = sbr.rel (0) target = $region25
    $region24: #{model_forward.1} parent=1 // pred_region
      _
    $region25: #{model_forward.1} parent=1 // pred_fallthru
      _
    %p27 = scmp.lt.u32.totalorder 1024, 8
    %p28 = pneg %p27
    // Predicated region
    $region26: #{model_forward.1} parent=1 // pred_check
      _
    $region27: #{model_forward.1} parent=1 // pred_check_branch
      %30 = sbr.rel (%p27) target = $region29
    $region28: #{model_forward.1} parent=1 // pred_region
      %s45 = sand.u32 1024, 7
      %p46 = scmp.eq.s32.totalorder %s45, 0
      // Predicated region
      $region41: #{model_forward.1} parent=28 // pred_check
        %p47 = pneg %p46
      $region42: #{model_forward.1} parent=28 // pred_check_branch
        %49 = sbr.rel (%p47) target = $region44
      $region43: #{model_forward.1} parent=28 // pred_region
        loop: start=0, step=1, limit=1
        $region45: #{model_forward.1} parent=43 // loop_pre_header
          _
        $region46: #{model_forward.1} parent=43 // loop_header
          %s51 = sphi 0, %s55
          %p52 = scmp.ge.s32.totalorder %s51, 1
          %s56 = sphi %s6, %s6
          %s57 = sphi [#allocation2], [#allocation2]
        $region47: #{model_forward.1} parent=43 // loop_header_branch
          %54 = sbr.rel (%p52) target = $region51
        $region48: #{model_forward.1} parent=43 // loop_body
          %v58 = vld [vmem:[%s56] sm:$0xff]
          %59 = vst [vmem:[%s57] sm:$0xff] %v58
          %v60 = vld [vmem:[%s56 + $0x8] sm:$0xff]
          %61 = vst [vmem:[%s57 + $0x8] sm:$0xff] %v60
          %v62 = vld [vmem:[%s56 + $0x10] sm:$0xff]
          %63 = vst [vmem:[%s57 + $0x10] sm:$0xff] %v62
          %v64 = vld [vmem:[%s56 + $0x18] sm:$0xff]
          %65 = vst [vmem:[%s57 + $0x18] sm:$0xff] %v64
          %v66 = vld [vmem:[%s56 + $0x20] sm:$0xff]
          %67 = vst [vmem:[%s57 + $0x20] sm:$0xff] %v66
          %v68 = vld [vmem:[%s56 + $0x28] sm:$0xff]
          %69 = vst [vmem:[%s57 + $0x28] sm:$0xff] %v68
          %v70 = vld [vmem:[%s56 + $0x30] sm:$0xff]
          %71 = vst [vmem:[%s57 + $0x30] sm:$0xff] %v70
          %v72 = vld [vmem:[%s56 + $0x38] sm:$0xff]
          %73 = vst [vmem:[%s57 + $0x38] sm:$0xff] %v72
          %v74 = vld [vmem:[%s56 + $0x40] sm:$0xff]
          %75 = vst [vmem:[%s57 + $0x40] sm:$0xff] %v74
          %v76 = vld [vmem:[%s56 + $0x48] sm:$0xff]
          %77 = vst [vmem:[%s57 + $0x48] sm:$0xff] %v76
          %v78 = vld [vmem:[%s56 + $0x50] sm:$0xff]
          %79 = vst [vmem:[%s57 + $0x50] sm:$0xff] %v78
          %v80 = vld [vmem:[%s56 + $0x58] sm:$0xff]
          %81 = vst [vmem:[%s57 + $0x58] sm:$0xff] %v80
          %v82 = vld [vmem:[%s56 + $0x60] sm:$0xff]
          %83 = vst [vmem:[%s57 + $0x60] sm:$0xff] %v82
          %v84 = vld [vmem:[%s56 + $0x68] sm:$0xff]
          %85 = vst [vmem:[%s57 + $0x68] sm:$0xff] %v84
          %v86 = vld [vmem:[%s56 + $0x70] sm:$0xff]
          %87 = vst [vmem:[%s57 + $0x70] sm:$0xff] %v86
          %v88 = vld [vmem:[%s56 + $0x78] sm:$0xff]
          %89 = vst [vmem:[%s57 + $0x78] sm:$0xff] %v88
          %v90 = vld [vmem:[%s56 + $0x80] sm:$0xff]
          %91 = vst [vmem:[%s57 + $0x80] sm:$0xff] %v90
          %v92 = vld [vmem:[%s56 + $0x88] sm:$0xff]
          %93 = vst [vmem:[%s57 + $0x88] sm:$0xff] %v92
          %v94 = vld [vmem:[%s56 + $0x90] sm:$0xff]
          %95 = vst [vmem:[%s57 + $0x90] sm:$0xff] %v94
          %v96 = vld [vmem:[%s56 + $0x98] sm:$0xff]
          %97 = vst [vmem:[%s57 + $0x98] sm:$0xff] %v96
          %v98 = vld [vmem:[%s56 + $0xa0] sm:$0xff]
          %99 = vst [vmem:[%s57 + $0xa0] sm:$0xff] %v98
          %v100 = vld [vmem:[%s56 + $0xa8] sm:$0xff]
          %101 = vst [vmem:[%s57 + $0xa8] sm:$0xff] %v100
          %v102 = vld [vmem:[%s56 + $0xb0] sm:$0xff]
          %103 = vst [vmem:[%s57 + $0xb0] sm:$0xff] %v102
          %v104 = vld [vmem:[%s56 + $0xb8] sm:$0xff]
          %105 = vst [vmem:[%s57 + $0xb8] sm:$0xff] %v104
          %v106 = vld [vmem:[%s56 + $0xc0] sm:$0xff]
          %107 = vst [vmem:[%s57 + $0xc0] sm:$0xff] %v106
          %v108 = vld [vmem:[%s56 + $0xc8] sm:$0xff]
          %109 = vst [vmem:[%s57 + $0xc8] sm:$0xff] %v108
          %v110 = vld [vmem:[%s56 + $0xd0] sm:$0xff]
          %111 = vst [vmem:[%s57 + $0xd0] sm:$0xff] %v110
          %v112 = vld [vmem:[%s56 + $0xd8] sm:$0xff]
          %113 = vst [vmem:[%s57 + $0xd8] sm:$0xff] %v112
          %v114 = vld [vmem:[%s56 + $0xe0] sm:$0xff]
          %115 = vst [vmem:[%s57 + $0xe0] sm:$0xff] %v114
          %v116 = vld [vmem:[%s56 + $0xe8] sm:$0xff]
          %117 = vst [vmem:[%s57 + $0xe8] sm:$0xff] %v116
          %v118 = vld [vmem:[%s56 + $0xf0] sm:$0xff]
          %119 = vst [vmem:[%s57 + $0xf0] sm:$0xff] %v118
          %v120 = vld [vmem:[%s56 + $0xf8] sm:$0xff]
          %121 = vst [vmem:[%s57 + $0xf8] sm:$0xff] %v120
          %v122 = vld [vmem:[%s56 + $0x100] sm:$0xff]
          %123 = vst [vmem:[%s57 + $0x100] sm:$0xff] %v122
          %v124 = vld [vmem:[%s56 + $0x108] sm:$0xff]
          %125 = vst [vmem:[%s57 + $0x108] sm:$0xff] %v124
          %v126 = vld [vmem:[%s56 + $0x110] sm:$0xff]
          %127 = vst [vmem:[%s57 + $0x110] sm:$0xff] %v126
          %v128 = vld [vmem:[%s56 + $0x118] sm:$0xff]
          %129 = vst [vmem:[%s57 + $0x118] sm:$0xff] %v128
          %v130 = vld [vmem:[%s56 + $0x120] sm:$0xff]
          %131 = vst [vmem:[%s57 + $0x120] sm:$0xff] %v130
          %v132 = vld [vmem:[%s56 + $0x128] sm:$0xff]
          %133 = vst [vmem:[%s57 + $0x128] sm:$0xff] %v132
          %v134 = vld [vmem:[%s56 + $0x130] sm:$0xff]
          %135 = vst [vmem:[%s57 + $0x130] sm:$0xff] %v134
          %v136 = vld [vmem:[%s56 + $0x138] sm:$0xff]
          %137 = vst [vmem:[%s57 + $0x138] sm:$0xff] %v136
          %v138 = vld [vmem:[%s56 + $0x140] sm:$0xff]
          %139 = vst [vmem:[%s57 + $0x140] sm:$0xff] %v138
          %v140 = vld [vmem:[%s56 + $0x148] sm:$0xff]
          %141 = vst [vmem:[%s57 + $0x148] sm:$0xff] %v140
          %v142 = vld [vmem:[%s56 + $0x150] sm:$0xff]
          %143 = vst [vmem:[%s57 + $0x150] sm:$0xff] %v142
          %v144 = vld [vmem:[%s56 + $0x158] sm:$0xff]
          %145 = vst [vmem:[%s57 + $0x158] sm:$0xff] %v144
          %v146 = vld [vmem:[%s56 + $0x160] sm:$0xff]
          %147 = vst [vmem:[%s57 + $0x160] sm:$0xff] %v146
          %v148 = vld [vmem:[%s56 + $0x168] sm:$0xff]
          %149 = vst [vmem:[%s57 + $0x168] sm:$0xff] %v148
          %v150 = vld [vmem:[%s56 + $0x170] sm:$0xff]
          %151 = vst [vmem:[%s57 + $0x170] sm:$0xff] %v150
          %v152 = vld [vmem:[%s56 + $0x178] sm:$0xff]
          %153 = vst [vmem:[%s57 + $0x178] sm:$0xff] %v152
          %v154 = vld [vmem:[%s56 + $0x180] sm:$0xff]
          %155 = vst [vmem:[%s57 + $0x180] sm:$0xff] %v154
          %v156 = vld [vmem:[%s56 + $0x188] sm:$0xff]
          %157 = vst [vmem:[%s57 + $0x188] sm:$0xff] %v156
          %v158 = vld [vmem:[%s56 + $0x190] sm:$0xff]
          %159 = vst [vmem:[%s57 + $0x190] sm:$0xff] %v158
          %v160 = vld [vmem:[%s56 + $0x198] sm:$0xff]
          %161 = vst [vmem:[%s57 + $0x198] sm:$0xff] %v160
          %v162 = vld [vmem:[%s56 + $0x1a0] sm:$0xff]
          %163 = vst [vmem:[%s57 + $0x1a0] sm:$0xff] %v162
          %v164 = vld [vmem:[%s56 + $0x1a8] sm:$0xff]
          %165 = vst [vmem:[%s57 + $0x1a8] sm:$0xff] %v164
          %v166 = vld [vmem:[%s56 + $0x1b0] sm:$0xff]
          %167 = vst [vmem:[%s57 + $0x1b0] sm:$0xff] %v166
          %v168 = vld [vmem:[%s56 + $0x1b8] sm:$0xff]
          %169 = vst [vmem:[%s57 + $0x1b8] sm:$0xff] %v168
          %v170 = vld [vmem:[%s56 + $0x1c0] sm:$0xff]
          %171 = vst [vmem:[%s57 + $0x1c0] sm:$0xff] %v170
          %v172 = vld [vmem:[%s56 + $0x1c8] sm:$0xff]
          %173 = vst [vmem:[%s57 + $0x1c8] sm:$0xff] %v172
          %v174 = vld [vmem:[%s56 + $0x1d0] sm:$0xff]
          %175 = vst [vmem:[%s57 + $0x1d0] sm:$0xff] %v174
          %v176 = vld [vmem:[%s56 + $0x1d8] sm:$0xff]
          %177 = vst [vmem:[%s57 + $0x1d8] sm:$0xff] %v176
          %v178 = vld [vmem:[%s56 + $0x1e0] sm:$0xff]
          %179 = vst [vmem:[%s57 + $0x1e0] sm:$0xff] %v178
          %v180 = vld [vmem:[%s56 + $0x1e8] sm:$0xff]
          %181 = vst [vmem:[%s57 + $0x1e8] sm:$0xff] %v180
          %v182 = vld [vmem:[%s56 + $0x1f0] sm:$0xff]
          %183 = vst [vmem:[%s57 + $0x1f0] sm:$0xff] %v182
          %v184 = vld [vmem:[%s56 + $0x1f8] sm:$0xff]
          %185 = vst [vmem:[%s57 + $0x1f8] sm:$0xff] %v184
          %v186 = vld [vmem:[%s56 + $0x200] sm:$0xff]
          %187 = vst [vmem:[%s57 + $0x200] sm:$0xff] %v186
          %v188 = vld [vmem:[%s56 + $0x208] sm:$0xff]
          %189 = vst [vmem:[%s57 + $0x208] sm:$0xff] %v188
          %v190 = vld [vmem:[%s56 + $0x210] sm:$0xff]
          %191 = vst [vmem:[%s57 + $0x210] sm:$0xff] %v190
          %v192 = vld [vmem:[%s56 + $0x218] sm:$0xff]
          %193 = vst [vmem:[%s57 + $0x218] sm:$0xff] %v192
          %v194 = vld [vmem:[%s56 + $0x220] sm:$0xff]
          %195 = vst [vmem:[%s57 + $0x220] sm:$0xff] %v194
          %v196 = vld [vmem:[%s56 + $0x228] sm:$0xff]
          %197 = vst [vmem:[%s57 + $0x228] sm:$0xff] %v196
          %v198 = vld [vmem:[%s56 + $0x230] sm:$0xff]
          %199 = vst [vmem:[%s57 + $0x230] sm:$0xff] %v198
          %v200 = vld [vmem:[%s56 + $0x238] sm:$0xff]
          %201 = vst [vmem:[%s57 + $0x238] sm:$0xff] %v200
          %v202 = vld [vmem:[%s56 + $0x240] sm:$0xff]
          %203 = vst [vmem:[%s57 + $0x240] sm:$0xff] %v202
          %v204 = vld [vmem:[%s56 + $0x248] sm:$0xff]
          %205 = vst [vmem:[%s57 + $0x248] sm:$0xff] %v204
          %v206 = vld [vmem:[%s56 + $0x250] sm:$0xff]
          %207 = vst [vmem:[%s57 + $0x250] sm:$0xff] %v206
          %v208 = vld [vmem:[%s56 + $0x258] sm:$0xff]
          %209 = vst [vmem:[%s57 + $0x258] sm:$0xff] %v208
          %v210 = vld [vmem:[%s56 + $0x260] sm:$0xff]
          %211 = vst [vmem:[%s57 + $0x260] sm:$0xff] %v210
          %v212 = vld [vmem:[%s56 + $0x268] sm:$0xff]
          %213 = vst [vmem:[%s57 + $0x268] sm:$0xff] %v212
          %v214 = vld [vmem:[%s56 + $0x270] sm:$0xff]
          %215 = vst [vmem:[%s57 + $0x270] sm:$0xff] %v214
          %v216 = vld [vmem:[%s56 + $0x278] sm:$0xff]
          %217 = vst [vmem:[%s57 + $0x278] sm:$0xff] %v216
          %v218 = vld [vmem:[%s56 + $0x280] sm:$0xff]
          %219 = vst [vmem:[%s57 + $0x280] sm:$0xff] %v218
          %v220 = vld [vmem:[%s56 + $0x288] sm:$0xff]
          %221 = vst [vmem:[%s57 + $0x288] sm:$0xff] %v220
          %v222 = vld [vmem:[%s56 + $0x290] sm:$0xff]
          %223 = vst [vmem:[%s57 + $0x290] sm:$0xff] %v222
          %v224 = vld [vmem:[%s56 + $0x298] sm:$0xff]
          %225 = vst [vmem:[%s57 + $0x298] sm:$0xff] %v224
          %v226 = vld [vmem:[%s56 + $0x2a0] sm:$0xff]
          %227 = vst [vmem:[%s57 + $0x2a0] sm:$0xff] %v226
          %v228 = vld [vmem:[%s56 + $0x2a8] sm:$0xff]
          %229 = vst [vmem:[%s57 + $0x2a8] sm:$0xff] %v228
          %v230 = vld [vmem:[%s56 + $0x2b0] sm:$0xff]
          %231 = vst [vmem:[%s57 + $0x2b0] sm:$0xff] %v230
          %v232 = vld [vmem:[%s56 + $0x2b8] sm:$0xff]
          %233 = vst [vmem:[%s57 + $0x2b8] sm:$0xff] %v232
          %v234 = vld [vmem:[%s56 + $0x2c0] sm:$0xff]
          %235 = vst [vmem:[%s57 + $0x2c0] sm:$0xff] %v234
          %v236 = vld [vmem:[%s56 + $0x2c8] sm:$0xff]
          %237 = vst [vmem:[%s57 + $0x2c8] sm:$0xff] %v236
          %v238 = vld [vmem:[%s56 + $0x2d0] sm:$0xff]
          %239 = vst [vmem:[%s57 + $0x2d0] sm:$0xff] %v238
          %v240 = vld [vmem:[%s56 + $0x2d8] sm:$0xff]
          %241 = vst [vmem:[%s57 + $0x2d8] sm:$0xff] %v240
          %v242 = vld [vmem:[%s56 + $0x2e0] sm:$0xff]
          %243 = vst [vmem:[%s57 + $0x2e0] sm:$0xff] %v242
          %v244 = vld [vmem:[%s56 + $0x2e8] sm:$0xff]
          %245 = vst [vmem:[%s57 + $0x2e8] sm:$0xff] %v244
          %v246 = vld [vmem:[%s56 + $0x2f0] sm:$0xff]
          %247 = vst [vmem:[%s57 + $0x2f0] sm:$0xff] %v246
          %v248 = vld [vmem:[%s56 + $0x2f8] sm:$0xff]
          %249 = vst [vmem:[%s57 + $0x2f8] sm:$0xff] %v248
          %v250 = vld [vmem:[%s56 + $0x300] sm:$0xff]
          %251 = vst [vmem:[%s57 + $0x300] sm:$0xff] %v250
          %v252 = vld [vmem:[%s56 + $0x308] sm:$0xff]
          %253 = vst [vmem:[%s57 + $0x308] sm:$0xff] %v252
          %v254 = vld [vmem:[%s56 + $0x310] sm:$0xff]
          %255 = vst [vmem:[%s57 + $0x310] sm:$0xff] %v254
          %v256 = vld [vmem:[%s56 + $0x318] sm:$0xff]
          %257 = vst [vmem:[%s57 + $0x318] sm:$0xff] %v256
          %v258 = vld [vmem:[%s56 + $0x320] sm:$0xff]
          %259 = vst [vmem:[%s57 + $0x320] sm:$0xff] %v258
          %v260 = vld [vmem:[%s56 + $0x328] sm:$0xff]
          %261 = vst [vmem:[%s57 + $0x328] sm:$0xff] %v260
          %v262 = vld [vmem:[%s56 + $0x330] sm:$0xff]
          %263 = vst [vmem:[%s57 + $0x330] sm:$0xff] %v262
          %v264 = vld [vmem:[%s56 + $0x338] sm:$0xff]
          %265 = vst [vmem:[%s57 + $0x338] sm:$0xff] %v264
          %v266 = vld [vmem:[%s56 + $0x340] sm:$0xff]
          %267 = vst [vmem:[%s57 + $0x340] sm:$0xff] %v266
          %v268 = vld [vmem:[%s56 + $0x348] sm:$0xff]
          %269 = vst [vmem:[%s57 + $0x348] sm:$0xff] %v268
          %v270 = vld [vmem:[%s56 + $0x350] sm:$0xff]
          %271 = vst [vmem:[%s57 + $0x350] sm:$0xff] %v270
          %v272 = vld [vmem:[%s56 + $0x358] sm:$0xff]
          %273 = vst [vmem:[%s57 + $0x358] sm:$0xff] %v272
          %v274 = vld [vmem:[%s56 + $0x360] sm:$0xff]
          %275 = vst [vmem:[%s57 + $0x360] sm:$0xff] %v274
          %v276 = vld [vmem:[%s56 + $0x368] sm:$0xff]
          %277 = vst [vmem:[%s57 + $0x368] sm:$0xff] %v276
          %v278 = vld [vmem:[%s56 + $0x370] sm:$0xff]
          %279 = vst [vmem:[%s57 + $0x370] sm:$0xff] %v278
          %v280 = vld [vmem:[%s56 + $0x378] sm:$0xff]
          %281 = vst [vmem:[%s57 + $0x378] sm:$0xff] %v280
          %v282 = vld [vmem:[%s56 + $0x380] sm:$0xff]
          %283 = vst [vmem:[%s57 + $0x380] sm:$0xff] %v282
          %v284 = vld [vmem:[%s56 + $0x388] sm:$0xff]
          %285 = vst [vmem:[%s57 + $0x388] sm:$0xff] %v284
          %v286 = vld [vmem:[%s56 + $0x390] sm:$0xff]
          %287 = vst [vmem:[%s57 + $0x390] sm:$0xff] %v286
          %v288 = vld [vmem:[%s56 + $0x398] sm:$0xff]
          %289 = vst [vmem:[%s57 + $0x398] sm:$0xff] %v288
          %v290 = vld [vmem:[%s56 + $0x3a0] sm:$0xff]
          %291 = vst [vmem:[%s57 + $0x3a0] sm:$0xff] %v290
          %v292 = vld [vmem:[%s56 + $0x3a8] sm:$0xff]
          %293 = vst [vmem:[%s57 + $0x3a8] sm:$0xff] %v292
          %v294 = vld [vmem:[%s56 + $0x3b0] sm:$0xff]
          %295 = vst [vmem:[%s57 + $0x3b0] sm:$0xff] %v294
          %v296 = vld [vmem:[%s56 + $0x3b8] sm:$0xff]
          %297 = vst [vmem:[%s57 + $0x3b8] sm:$0xff] %v296
          %v298 = vld [vmem:[%s56 + $0x3c0] sm:$0xff]
          %299 = vst [vmem:[%s57 + $0x3c0] sm:$0xff] %v298
          %v300 = vld [vmem:[%s56 + $0x3c8] sm:$0xff]
          %301 = vst [vmem:[%s57 + $0x3c8] sm:$0xff] %v300
          %v302 = vld [vmem:[%s56 + $0x3d0] sm:$0xff]
          %303 = vst [vmem:[%s57 + $0x3d0] sm:$0xff] %v302
          %v304 = vld [vmem:[%s56 + $0x3d8] sm:$0xff]
          %305 = vst [vmem:[%s57 + $0x3d8] sm:$0xff] %v304
          %v306 = vld [vmem:[%s56 + $0x3e0] sm:$0xff]
          %307 = vst [vmem:[%s57 + $0x3e0] sm:$0xff] %v306
          %v308 = vld [vmem:[%s56 + $0x3e8] sm:$0xff]
          %309 = vst [vmem:[%s57 + $0x3e8] sm:$0xff] %v308
          %v310 = vld [vmem:[%s56 + $0x3f0] sm:$0xff]
          %311 = vst [vmem:[%s57 + $0x3f0] sm:$0xff] %v310
          %v312 = vld [vmem:[%s56 + $0x3f8] sm:$0xff]
          %313 = vst [vmem:[%s57 + $0x3f8] sm:$0xff] %v312
        $region49: #{model_forward.1} parent=43 // loop_footer
          %s55 = sadd.s32 1, %s51
        $region50: #{model_forward.1} parent=43 // loop_footer_branch
          %50 = sbr.rel target = $region46
        $region51: #{model_forward.1} parent=43 // loop_exit
          _
      $region44: #{model_forward.1} parent=28 // pred_fallthru
        _
      %p314 = pneg %p46
      // Predicated region
      $region52: #{model_forward.1} parent=28 // pred_check
        _
      $region53: #{model_forward.1} parent=28 // pred_check_branch
        %316 = sbr.rel (%p46) target = $region55
      $region54: #{model_forward.1} parent=28 // pred_region
        %s317 = sand.u32 1024, 7
      $region55: #{model_forward.1} parent=28 // pred_fallthru
        _
    $region29: #{model_forward.1} parent=1 // pred_fallthru
      _
    // Predicated region
    $region30: #{model_forward.1} parent=1 // pred_check
      %p31 = pneg %p27
    $region31: #{model_forward.1} parent=1 // pred_check_branch
      %33 = sbr.rel (%p31) target = $region33
    $region32: #{model_forward.1} parent=1 // pred_region
      %s34 = sshllo.u32 0, 1024
      loop: start=0, step=1, limit=1
      $region34: #{model_forward.1} parent=32 // loop_pre_header
        _
      $region35: #{model_forward.1} parent=32 // loop_header
        %s36 = sphi 0, %s40
        %p37 = scmp.ge.s32.totalorder %s36, 1
        %s41 = sphi %s6, %s6
        %s42 = sphi [#allocation2], [#allocation2]
      $region36: #{model_forward.1} parent=32 // loop_header_branch
        %39 = sbr.rel (%p37) target = $region40
      $region37: #{model_forward.1} parent=32 // loop_body
        %v43 = vld [vmem:[%s41] sm:%s34]
        %44 = vst [vmem:[%s42] sm:%s34] %v43
      $region38: #{model_forward.1} parent=32 // loop_footer
        %s40 = sadd.s32 1, %s36
      $region39: #{model_forward.1} parent=32 // loop_footer_branch
        %35 = sbr.rel target = $region35
      $region40: #{model_forward.1} parent=32 // loop_exit
        _
    $region33: #{model_forward.1} parent=1 // pred_fallthru
      _
    // Predicated region
    $region56: #{model_forward.1} parent=1 // pred_check
      _
    $region57: #{model_forward.1} parent=1 // pred_check_branch
      %320 = sbr.rel (0) target = $region59
    $region58: #{model_forward.1} parent=1 // pred_region
      %321 = vsyncadd [#allocation4], 16384
    $region59: #{model_forward.1} parent=1 // pred_fallthru
      _
    %s322 = scalar_lea.sflag [#allocation4], 1
    %p324 = scmp.lt.u32.totalorder 256, 8
    %p325 = pneg %p324
    // Predicated region
    $region60: #{model_forward.1} parent=1 // pred_check
      _
    $region61: #{model_forward.1} parent=1 // pred_check_branch
      %327 = sbr.rel (%p324) target = $region63
    $region62: #{model_forward.1} parent=1 // pred_region
      %s342 = sand.u32 256, 7
      %p343 = scmp.eq.s32.totalorder %s342, 0
      // Predicated region
      $region75: #{model_forward.1} parent=62 // pred_check
        %p344 = pneg %p343
      $region76: #{model_forward.1} parent=62 // pred_check_branch
        %346 = sbr.rel (%p344) target = $region78
      $region77: #{model_forward.1} parent=62 // pred_region
        loop: start=0, step=1, limit=1
        $region79: #{model_forward.1} parent=77 // loop_pre_header
          _
        $region80: #{model_forward.1} parent=77 // loop_header
          %s348 = sphi 0, %s352
          %p349 = scmp.ge.s32.totalorder %s348, 1
          %s353 = sphi %s7, %s7
          %s354 = sphi [#allocation3], [#allocation3]
        $region81: #{model_forward.1} parent=77 // loop_header_branch
          %351 = sbr.rel (%p349) target = $region85
        $region82: #{model_forward.1} parent=77 // loop_body
          %v355 = vld [vmem:[%s353] sm:$0xff]
          %356 = vst [vmem:[%s354] sm:$0xff] %v355
          %v357 = vld [vmem:[%s353 + $0x8] sm:$0xff]
          %358 = vst [vmem:[%s354 + $0x8] sm:$0xff] %v357
          %v359 = vld [vmem:[%s353 + $0x10] sm:$0xff]
          %360 = vst [vmem:[%s354 + $0x10] sm:$0xff] %v359
          %v361 = vld [vmem:[%s353 + $0x18] sm:$0xff]
          %362 = vst [vmem:[%s354 + $0x18] sm:$0xff] %v361
          %v363 = vld [vmem:[%s353 + $0x20] sm:$0xff]
          %364 = vst [vmem:[%s354 + $0x20] sm:$0xff] %v363
          %v365 = vld [vmem:[%s353 + $0x28] sm:$0xff]
          %366 = vst [vmem:[%s354 + $0x28] sm:$0xff] %v365
          %v367 = vld [vmem:[%s353 + $0x30] sm:$0xff]
          %368 = vst [vmem:[%s354 + $0x30] sm:$0xff] %v367
          %v369 = vld [vmem:[%s353 + $0x38] sm:$0xff]
          %370 = vst [vmem:[%s354 + $0x38] sm:$0xff] %v369
          %v371 = vld [vmem:[%s353 + $0x40] sm:$0xff]
          %372 = vst [vmem:[%s354 + $0x40] sm:$0xff] %v371
          %v373 = vld [vmem:[%s353 + $0x48] sm:$0xff]
          %374 = vst [vmem:[%s354 + $0x48] sm:$0xff] %v373
          %v375 = vld [vmem:[%s353 + $0x50] sm:$0xff]
          %376 = vst [vmem:[%s354 + $0x50] sm:$0xff] %v375
          %v377 = vld [vmem:[%s353 + $0x58] sm:$0xff]
          %378 = vst [vmem:[%s354 + $0x58] sm:$0xff] %v377
          %v379 = vld [vmem:[%s353 + $0x60] sm:$0xff]
          %380 = vst [vmem:[%s354 + $0x60] sm:$0xff] %v379
          %v381 = vld [vmem:[%s353 + $0x68] sm:$0xff]
          %382 = vst [vmem:[%s354 + $0x68] sm:$0xff] %v381
          %v383 = vld [vmem:[%s353 + $0x70] sm:$0xff]
          %384 = vst [vmem:[%s354 + $0x70] sm:$0xff] %v383
          %v385 = vld [vmem:[%s353 + $0x78] sm:$0xff]
          %386 = vst [vmem:[%s354 + $0x78] sm:$0xff] %v385
          %v387 = vld [vmem:[%s353 + $0x80] sm:$0xff]
          %388 = vst [vmem:[%s354 + $0x80] sm:$0xff] %v387
          %v389 = vld [vmem:[%s353 + $0x88] sm:$0xff]
          %390 = vst [vmem:[%s354 + $0x88] sm:$0xff] %v389
          %v391 = vld [vmem:[%s353 + $0x90] sm:$0xff]
          %392 = vst [vmem:[%s354 + $0x90] sm:$0xff] %v391
          %v393 = vld [vmem:[%s353 + $0x98] sm:$0xff]
          %394 = vst [vmem:[%s354 + $0x98] sm:$0xff] %v393
          %v395 = vld [vmem:[%s353 + $0xa0] sm:$0xff]
          %396 = vst [vmem:[%s354 + $0xa0] sm:$0xff] %v395
          %v397 = vld [vmem:[%s353 + $0xa8] sm:$0xff]
          %398 = vst [vmem:[%s354 + $0xa8] sm:$0xff] %v397
          %v399 = vld [vmem:[%s353 + $0xb0] sm:$0xff]
          %400 = vst [vmem:[%s354 + $0xb0] sm:$0xff] %v399
          %v401 = vld [vmem:[%s353 + $0xb8] sm:$0xff]
          %402 = vst [vmem:[%s354 + $0xb8] sm:$0xff] %v401
          %v403 = vld [vmem:[%s353 + $0xc0] sm:$0xff]
          %404 = vst [vmem:[%s354 + $0xc0] sm:$0xff] %v403
          %v405 = vld [vmem:[%s353 + $0xc8] sm:$0xff]
          %406 = vst [vmem:[%s354 + $0xc8] sm:$0xff] %v405
          %v407 = vld [vmem:[%s353 + $0xd0] sm:$0xff]
          %408 = vst [vmem:[%s354 + $0xd0] sm:$0xff] %v407
          %v409 = vld [vmem:[%s353 + $0xd8] sm:$0xff]
          %410 = vst [vmem:[%s354 + $0xd8] sm:$0xff] %v409
          %v411 = vld [vmem:[%s353 + $0xe0] sm:$0xff]
          %412 = vst [vmem:[%s354 + $0xe0] sm:$0xff] %v411
          %v413 = vld [vmem:[%s353 + $0xe8] sm:$0xff]
          %414 = vst [vmem:[%s354 + $0xe8] sm:$0xff] %v413
          %v415 = vld [vmem:[%s353 + $0xf0] sm:$0xff]
          %416 = vst [vmem:[%s354 + $0xf0] sm:$0xff] %v415
          %v417 = vld [vmem:[%s353 + $0xf8] sm:$0xff]
          %418 = vst [vmem:[%s354 + $0xf8] sm:$0xff] %v417
        $region83: #{model_forward.1} parent=77 // loop_footer
          %s352 = sadd.s32 1, %s348
        $region84: #{model_forward.1} parent=77 // loop_footer_branch
          %347 = sbr.rel target = $region80
        $region85: #{model_forward.1} parent=77 // loop_exit
          _
      $region78: #{model_forward.1} parent=62 // pred_fallthru
        _
      %p419 = pneg %p343
      // Predicated region
      $region86: #{model_forward.1} parent=62 // pred_check
        _
      $region87: #{model_forward.1} parent=62 // pred_check_branch
        %421 = sbr.rel (%p343) target = $region89
      $region88: #{model_forward.1} parent=62 // pred_region
        %s422 = sand.u32 256, 7
      $region89: #{model_forward.1} parent=62 // pred_fallthru
        _
    $region63: #{model_forward.1} parent=1 // pred_fallthru
      _
    // Predicated region
    $region64: #{model_forward.1} parent=1 // pred_check
      %p328 = pneg %p324
    $region65: #{model_forward.1} parent=1 // pred_check_branch
      %330 = sbr.rel (%p328) target = $region67
    $region66: #{model_forward.1} parent=1 // pred_region
      %s331 = sshllo.u32 0, 256
      loop: start=0, step=1, limit=1
      $region68: #{model_forward.1} parent=66 // loop_pre_header
        _
      $region69: #{model_forward.1} parent=66 // loop_header
        %s333 = sphi 0, %s337
        %p334 = scmp.ge.s32.totalorder %s333, 1
        %s338 = sphi %s7, %s7
        %s339 = sphi [#allocation3], [#allocation3]
      $region70: #{model_forward.1} parent=66 // loop_header_branch
        %336 = sbr.rel (%p334) target = $region74
      $region71: #{model_forward.1} parent=66 // loop_body
        %v340 = vld [vmem:[%s338] sm:%s331]
        %341 = vst [vmem:[%s339] sm:%s331] %v340
      $region72: #{model_forward.1} parent=66 // loop_footer
        %s337 = sadd.s32 1, %s333
      $region73: #{model_forward.1} parent=66 // loop_footer_branch
        %332 = sbr.rel target = $region69
      $region74: #{model_forward.1} parent=66 // loop_exit
        _
    $region67: #{model_forward.1} parent=1 // pred_fallthru
      _
    // Predicated region
    $region90: #{model_forward.1} parent=1 // pred_check
      _
    $region91: #{model_forward.1} parent=1 // pred_check_branch
      %425 = sbr.rel (0) target = $region93
    $region92: #{model_forward.1} parent=1 // pred_region
      %426 = vsyncadd %s322, 4096
    $region93: #{model_forward.1} parent=1 // pred_fallthru
      _
    %v427 = vld [vmem:[%s0] sm:$0xff]
    %v428 = vld [vmem:[%s0 + $0x8] sm:$0xff]
    %v429 = vld [vmem:[%s0 + $0x10] sm:$0xff]
    %v430 = vld [vmem:[%s0 + $0x18] sm:$0xff]
    %v431 = vld [vmem:[%s0 + $0x20] sm:$0xff]
    %v432 = vld [vmem:[%s0 + $0x28] sm:$0xff]
    %v433 = vld [vmem:[%s0 + $0x30] sm:$0xff]
    %v434 = vld [vmem:[%s0 + $0x38] sm:$0xff]
    %v435 = vld [vmem:[%s0 + $0x40] sm:$0xff]
    %v436 = vld [vmem:[%s0 + $0x48] sm:$0xff]
    %v437 = vld [vmem:[%s0 + $0x50] sm:$0xff]
    %v438 = vld [vmem:[%s0 + $0x58] sm:$0xff]
    %v439 = vld [vmem:[%s0 + $0x60] sm:$0xff]
    %v440 = vld [vmem:[%s0 + $0x68] sm:$0xff]
    %v441 = vld [vmem:[%s0 + $0x70] sm:$0xff]
    %v442 = vld [vmem:[%s0 + $0x78] sm:$0xff]
    %v443 = vld [vmem:[%s0 + $0x80] sm:$0xff]
    %v444 = vld [vmem:[%s0 + $0x88] sm:$0xff]
    %v445 = vld [vmem:[%s0 + $0x90] sm:$0xff]
    %v446 = vld [vmem:[%s0 + $0x98] sm:$0xff]
    %v447 = vld [vmem:[%s0 + $0xa0] sm:$0xff]
    %v448 = vld [vmem:[%s0 + $0xa8] sm:$0xff]
    %v449 = vld [vmem:[%s0 + $0xb0] sm:$0xff]
    %v450 = vld [vmem:[%s0 + $0xb8] sm:$0xff]
    %v451 = vld [vmem:[%s0 + $0xc0] sm:$0xff]
    %v452 = vld [vmem:[%s0 + $0xc8] sm:$0xff]
    %v453 = vld [vmem:[%s0 + $0xd0] sm:$0xff]
    %v454 = vld [vmem:[%s0 + $0xd8] sm:$0xff]
    %v455 = vld [vmem:[%s0 + $0xe0] sm:$0xff]
    %v456 = vld [vmem:[%s0 + $0xe8] sm:$0xff]
    %v457 = vld [vmem:[%s0 + $0xf0] sm:$0xff]
    %v458 = vld [vmem:[%s0 + $0xf8] sm:$0xff]
    %v459 = vld [vmem:[%s0 + $0x100] sm:$0xff]
    %v460 = vld [vmem:[%s0 + $0x108] sm:$0xff]
    %v461 = vld [vmem:[%s0 + $0x110] sm:$0xff]
    %v462 = vld [vmem:[%s0 + $0x118] sm:$0xff]
    %v463 = vld [vmem:[%s0 + $0x120] sm:$0xff]
    %v464 = vld [vmem:[%s0 + $0x128] sm:$0xff]
    %v465 = vld [vmem:[%s0 + $0x130] sm:$0xff]
    %v466 = vld [vmem:[%s0 + $0x138] sm:$0xff]
    %v467 = vld [vmem:[%s0 + $0x140] sm:$0xff]
    %v468 = vld [vmem:[%s0 + $0x148] sm:$0xff]
    %v469 = vld [vmem:[%s0 + $0x150] sm:$0xff]
    %v470 = vld [vmem:[%s0 + $0x158] sm:$0xff]
    %v471 = vld [vmem:[%s0 + $0x160] sm:$0xff]
    %v472 = vld [vmem:[%s0 + $0x168] sm:$0xff]
    %v473 = vld [vmem:[%s0 + $0x170] sm:$0xff]
    %v474 = vld [vmem:[%s0 + $0x178] sm:$0xff]
    %v475 = vld [vmem:[%s0 + $0x180] sm:$0xff]
    %v476 = vld [vmem:[%s0 + $0x188] sm:$0xff]
    %v477 = vld [vmem:[%s0 + $0x190] sm:$0xff]
    %v478 = vld [vmem:[%s0 + $0x198] sm:$0xff]
    %v479 = vld [vmem:[%s0 + $0x1a0] sm:$0xff]
    %v480 = vld [vmem:[%s0 + $0x1a8] sm:$0xff]
    %v481 = vld [vmem:[%s0 + $0x1b0] sm:$0xff]
    %v482 = vld [vmem:[%s0 + $0x1b8] sm:$0xff]
    %v483 = vld [vmem:[%s0 + $0x1c0] sm:$0xff]
    %v484 = vld [vmem:[%s0 + $0x1c8] sm:$0xff]
    %v485 = vld [vmem:[%s0 + $0x1d0] sm:$0xff]
    %v486 = vld [vmem:[%s0 + $0x1d8] sm:$0xff]
    %v487 = vld [vmem:[%s0 + $0x1e0] sm:$0xff]
    %v488 = vld [vmem:[%s0 + $0x1e8] sm:$0xff]
    %v489 = vld [vmem:[%s0 + $0x1f0] sm:$0xff]
    %v490 = vld [vmem:[%s0 + $0x1f8] sm:$0xff]
    %v491 = vld [vmem:[%s1] sm:$0xff]
    %v492 = vld [vmem:[%s1 + $0x8] sm:$0xff]
    %v493 = vld [vmem:[%s1 + $0x10] sm:$0xff]
    %v494 = vld [vmem:[%s1 + $0x18] sm:$0xff]
    %v495 = vld [vmem:[%s1 + $0x20] sm:$0xff]
    %v496 = vld [vmem:[%s1 + $0x28] sm:$0xff]
    %v497 = vld [vmem:[%s1 + $0x30] sm:$0x1]
    %vm498 = vcmask 400384
    %v500 = vsel %vm498, %v427, 0
    %v503 = vsel %vm498, %v428, 0
    %v506 = vsel %vm498, %v429, 0
    %v509 = vsel %vm498, %v430, 0
    %v512 = vsel %vm498, %v431, 0
    %v515 = vsel %vm498, %v432, 0
    %v518 = vsel %vm498, %v433, 0
    %v521 = vsel %vm498, %v434, 0
    %v524 = vsel %vm498, %v435, 0
    %v527 = vsel %vm498, %v436, 0
    %v530 = vsel %vm498, %v437, 0
    %v533 = vsel %vm498, %v438, 0
    %v536 = vsel %vm498, %v439, 0
    %v539 = vsel %vm498, %v440, 0
    %v542 = vsel %vm498, %v441, 0
    %v545 = vsel %vm498, %v442, 0
    %v548 = vsel %vm498, %v443, 0
    %v551 = vsel %vm498, %v444, 0
    %v554 = vsel %vm498, %v445, 0
    %v557 = vsel %vm498, %v446, 0
    %v560 = vsel %vm498, %v447, 0
    %v563 = vsel %vm498, %v448, 0
    %v566 = vsel %vm498, %v449, 0
    %v569 = vsel %vm498, %v450, 0
    %v572 = vsel %vm498, %v451, 0
    %v575 = vsel %vm498, %v452, 0
    %v578 = vsel %vm498, %v453, 0
    %v581 = vsel %vm498, %v454, 0
    %v584 = vsel %vm498, %v455, 0
    %v587 = vsel %vm498, %v456, 0
    %v590 = vsel %vm498, %v457, 0
    %v593 = vsel %vm498, %v458, 0
    %v596 = vsel %vm498, %v459, 0
    %v599 = vsel %vm498, %v460, 0
    %v602 = vsel %vm498, %v461, 0
    %v605 = vsel %vm498, %v462, 0
    %v608 = vsel %vm498, %v463, 0
    %v611 = vsel %vm498, %v464, 0
    %v614 = vsel %vm498, %v465, 0
    %v617 = vsel %vm498, %v466, 0
    %v620 = vsel %vm498, %v467, 0
    %v623 = vsel %vm498, %v468, 0
    %v626 = vsel %vm498, %v469, 0
    %v629 = vsel %vm498, %v470, 0
    %v632 = vsel %vm498, %v471, 0
    %v635 = vsel %vm498, %v472, 0
    %v638 = vsel %vm498, %v473, 0
    %v641 = vsel %vm498, %v474, 0
    %v644 = vsel %vm498, %v475, 0
    %v647 = vsel %vm498, %v476, 0
    %v650 = vsel %vm498, %v477, 0
    %v653 = vsel %vm498, %v478, 0
    %v656 = vsel %vm498, %v479, 0
    %v659 = vsel %vm498, %v480, 0
    %v662 = vsel %vm498, %v481, 0
    %v665 = vsel %vm498, %v482, 0
    %v668 = vsel %vm498, %v483, 0
    %v671 = vsel %vm498, %v484, 0
    %v674 = vsel %vm498, %v485, 0
    %v677 = vsel %vm498, %v486, 0
    %v680 = vsel %vm498, %v487, 0
    %v683 = vsel %vm498, %v488, 0
    %v686 = vsel %vm498, %v489, 0
    %v689 = vsel %vm498, %v490, 0
    %vm691 = vcmask 1040384
    %v693 = vsel %vm691, %v497, 0
    %695 = vmatprep.subr.mxu0 0.0
    %696 = vmatpush1.msra.mxu0 %v491
    %697 = vmatprep.subr.mxu0 0.0
    %698 = vmatpush1.msra.mxu0 %v492
    %699 = vmatprep.subr.mxu0 0.0
    %700 = vmatpush1.msra.mxu0 %v493
    %701 = vmatprep.subr.mxu0 0.0
    %702 = vmatpush1.msra.mxu0 %v494
    %703 = vmatprep.subr.mxu0 0.0
    %704 = vmatpush1.msra.mxu0 %v495
    %705 = vmatprep.subr.mxu0 0.0
    %706 = vmatpush1.msra.mxu0 %v496
    %707 = vmatprep.subr.mxu0 0.0
    %708 = vmatpush1.msra.mxu0 %v693
    %709 = vmatprep.subr.mxu0 0.0
    %710 = vmatpush1.msra.mxu0 0.0
    %711 = vmatprep.subr.mxu0 0.0
    %712 = vmatpush1.msra.mxu0 0.0
    %713 = vmatprep.subr.mxu0 0.0
    %714 = vmatpush1.msra.mxu0 0.0
    %715 = vmatprep.subr.mxu0 0.0
    %716 = vmatpush1.msra.mxu0 0.0
    %717 = vmatprep.subr.mxu0 0.0
    %718 = vmatpush1.msra.mxu0 0.0
    %719 = vmatprep.subr.mxu0 0.0
    %720 = vmatpush1.msra.mxu0 0.0
    %721 = vmatprep.subr.mxu0 0.0
    %722 = vmatpush1.msra.mxu0 0.0
    %723 = vmatprep.subr.mxu0 0.0
    %724 = vmatpush1.msra.mxu0 0.0
    %725 = vmatprep.subr.mxu0 0.0
    %726 = vmatpush1.msra.mxu0 0.0
    %727 = vmatprep.subr.mxu0 0.0
    %728 = vmatpush1.msra.mxu0 0.0
    %729 = vmatprep.subr.mxu0 0.0
    %730 = vmatpush1.msra.mxu0 0.0
    %731 = vmatprep.subr.mxu0 0.0
    %732 = vmatpush1.msra.mxu0 0.0
    %733 = vmatprep.subr.mxu0 0.0
    %734 = vmatpush1.msra.mxu0 0.0
    %735 = vmatprep.subr.mxu0 0.0
    %736 = vmatpush1.msra.mxu0 0.0
    %737 = vmatprep.subr.mxu0 0.0
    %738 = vmatpush1.msra.mxu0 0.0
    %739 = vmatprep.subr.mxu0 0.0
    %740 = vmatpush1.msra.mxu0 0.0
    %741 = vmatprep.subr.mxu0 0.0
    %742 = vmatpush1.msra.mxu0 0.0
    %743 = vmatprep.subr.mxu0 0.0
    %744 = vmatpush1.msra.mxu0 0.0
    %745 = vmatprep.subr.mxu0 0.0
    %746 = vmatpush1.msra.mxu0 0.0
    %747 = vmatprep.subr.mxu0 0.0
    %748 = vmatpush1.msra.mxu0 0.0
    %749 = vmatprep.subr.mxu0 0.0
    %750 = vmatpush1.msra.mxu0 0.0
    %751 = vmatprep.subr.mxu0 0.0
    %752 = vmatpush1.msra.mxu0 0.0
    %753 = vmatprep.subr.mxu0 0.0
    %754 = vmatpush1.msra.mxu0 0.0
    %755 = vmatprep.subr.mxu0 0.0
    %756 = vmatpush1.msra.mxu0 0.0
    %757 = vmatprep.subr.mxu0 0.0
    %758 = vmatpush1.msra.mxu0 0.0
    %759 = vmatprep.mubr.f32.mxu0 0.0
    %760 = vmatmul.mubr.f32.gmra.mrb[0].mxu0 %v500
    %v761 = vpop.f32.mrb[0].mxu0
    %v762 = vadd.f32 0.0, %v761
    %v763 = vpop.f32.mrb[0].mxu0
    %764 = vmatprep.mubr.f32.mxu0 0.0
    %765 = vmatmul.mubr.f32.gmra.mrb[0].mxu0 %v503
    %v766 = vpop.f32.mrb[0].mxu0
    %v767 = vadd.f32 0.0, %v766
    %v768 = vpop.f32.mrb[0].mxu0
    %769 = vmatprep.mubr.f32.mxu0 0.0
    %770 = vmatmul.mubr.f32.gmra.mrb[0].mxu0 %v506
    %v771 = vpop.f32.mrb[0].mxu0
    %v772 = vadd.f32 0.0, %v771
    %v773 = vpop.f32.mrb[0].mxu0
    %774 = vmatprep.mubr.f32.mxu0 0.0
    %775 = vmatmul.mubr.f32.gmra.mrb[0].mxu0 %v509
    %v776 = vpop.f32.mrb[0].mxu0
    %v777 = vadd.f32 0.0, %v776
    %v778 = vpop.f32.mrb[0].mxu0
    %779 = vmatprep.mubr.f32.mxu0 0.0
    %780 = vmatmul.mubr.f32.gmra.mrb[0].mxu0 %v512
    %v781 = vpop.f32.mrb[0].mxu0
    %v782 = vadd.f32 0.0, %v781
    %v783 = vpop.f32.mrb[0].mxu0
    %784 = vmatprep.mubr.f32.mxu0 0.0
    %785 = vmatmul.mubr.f32.gmra.mrb[0].mxu0 %v515
    %v786 = vpop.f32.mrb[0].mxu0
    %v787 = vadd.f32 0.0, %v786
    %v788 = vpop.f32.mrb[0].mxu0
    %789 = vmatprep.mubr.f32.mxu0 0.0
    %790 = vmatmul.mubr.f32.gmra.mrb[0].mxu0 %v518
    %v791 = vpop.f32.mrb[0].mxu0
    %v792 = vadd.f32 0.0, %v791
    %v793 = vpop.f32.mrb[0].mxu0
    %794 = vmatprep.mubr.f32.mxu0 0.0
    %795 = vmatmul.mubr.f32.gmra.mrb[0].mxu0 %v521
    %v796 = vpop.f32.mrb[0].mxu0
    %v797 = vadd.f32 0.0, %v796
    %v798 = vpop.f32.mrb[0].mxu0
    %799 = vmatprep.mubr.f32.mxu0 0.0
    %800 = vmatmul.mubr.f32.gmra.mrb[0].mxu0 %v524
    %v801 = vpop.f32.mrb[0].mxu0
    %v802 = vadd.f32 0.0, %v801
    %v803 = vpop.f32.mrb[0].mxu0
    %804 = vmatprep.mubr.f32.mxu0 0.0
    %805 = vmatmul.mubr.f32.gmra.mrb[0].mxu0 %v527
    %v806 = vpop.f32.mrb[0].mxu0
    %v807 = vadd.f32 0.0, %v806
    %v808 = vpop.f32.mrb[0].mxu0
    %809 = vmatprep.mubr.f32.mxu0 0.0
    %810 = vmatmul.mubr.f32.gmra.mrb[0].mxu0 %v530
    %v811 = vpop.f32.mrb[0].mxu0
    %v812 = vadd.f32 0.0, %v811
    %v813 = vpop.f32.mrb[0].mxu0
    %814 = vmatprep.mubr.f32.mxu0 0.0
    %815 = vmatmul.mubr.f32.gmra.mrb[0].mxu0 %v533
    %v816 = vpop.f32.mrb[0].mxu0
    %v817 = vadd.f32 0.0, %v816
    %v818 = vpop.f32.mrb[0].mxu0
    %819 = vmatprep.mubr.f32.mxu0 0.0
    %820 = vmatmul.mubr.f32.gmra.mrb[0].mxu0 %v536
    %v821 = vpop.f32.mrb[0].mxu0
    %v822 = vadd.f32 0.0, %v821
    %v823 = vpop.f32.mrb[0].mxu0
    %824 = vmatprep.mubr.f32.mxu0 0.0
    %825 = vmatmul.mubr.f32.gmra.mrb[0].mxu0 %v539
    %v826 = vpop.f32.mrb[0].mxu0
    %v827 = vadd.f32 0.0, %v826
    %v828 = vpop.f32.mrb[0].mxu0
    %829 = vmatprep.mubr.f32.mxu0 0.0
    %830 = vmatmul.mubr.f32.gmra.mrb[0].mxu0 %v542
    %v831 = vpop.f32.mrb[0].mxu0
    %v832 = vadd.f32 0.0, %v831
    %v833 = vpop.f32.mrb[0].mxu0
    %834 = vmatprep.mubr.f32.mxu0 0.0
    %835 = vmatmul.mubr.f32.gmra.mrb[0].mxu0 %v545
    %v836 = vpop.f32.mrb[0].mxu0
    %v837 = vadd.f32 0.0, %v836
    %v838 = vpop.f32.mrb[0].mxu0
    %839 = vmatprep.mubr.f32.mxu0 0.0
    %840 = vmatmul.mubr.f32.gmra.mrb[0].mxu0 %v548
    %v841 = vpop.f32.mrb[0].mxu0
    %v842 = vadd.f32 0.0, %v841
    %v843 = vpop.f32.mrb[0].mxu0
    %844 = vmatprep.mubr.f32.mxu0 0.0
    %845 = vmatmul.mubr.f32.gmra.mrb[0].mxu0 %v551
    %v846 = vpop.f32.mrb[0].mxu0
    %v847 = vadd.f32 0.0, %v846
    %v848 = vpop.f32.mrb[0].mxu0
    %849 = vmatprep.mubr.f32.mxu0 0.0
    %850 = vmatmul.mubr.f32.gmra.mrb[0].mxu0 %v554
    %v851 = vpop.f32.mrb[0].mxu0
    %v852 = vadd.f32 0.0, %v851
    %v853 = vpop.f32.mrb[0].mxu0
    %854 = vmatprep.mubr.f32.mxu0 0.0
    %855 = vmatmul.mubr.f32.gmra.mrb[0].mxu0 %v557
    %v856 = vpop.f32.mrb[0].mxu0
    %v857 = vadd.f32 0.0, %v856
    %v858 = vpop.f32.mrb[0].mxu0
    %859 = vmatprep.mubr.f32.mxu0 0.0
    %860 = vmatmul.mubr.f32.gmra.mrb[0].mxu0 %v560
    %v861 = vpop.f32.mrb[0].mxu0
    %v862 = vadd.f32 0.0, %v861
    %v863 = vpop.f32.mrb[0].mxu0
    %864 = vmatprep.mubr.f32.mxu0 0.0
    %865 = vmatmul.mubr.f32.gmra.mrb[0].mxu0 %v563
    %v866 = vpop.f32.mrb[0].mxu0
    %v867 = vadd.f32 0.0, %v866
    %v868 = vpop.f32.mrb[0].mxu0
    %869 = vmatprep.mubr.f32.mxu0 0.0
    %870 = vmatmul.mubr.f32.gmra.mrb[0].mxu0 %v566
    %v871 = vpop.f32.mrb[0].mxu0
    %v872 = vadd.f32 0.0, %v871
    %v873 = vpop.f32.mrb[0].mxu0
    %874 = vmatprep.mubr.f32.mxu0 0.0
    %875 = vmatmul.mubr.f32.gmra.mrb[0].mxu0 %v569
    %v876 = vpop.f32.mrb[0].mxu0
    %v877 = vadd.f32 0.0, %v876
    %v878 = vpop.f32.mrb[0].mxu0
    %879 = vmatprep.mubr.f32.mxu0 0.0
    %880 = vmatmul.mubr.f32.gmra.mrb[0].mxu0 %v572
    %v881 = vpop.f32.mrb[0].mxu0
    %v882 = vadd.f32 0.0, %v881
    %v883 = vpop.f32.mrb[0].mxu0
    %884 = vmatprep.mubr.f32.mxu0 0.0
    %885 = vmatmul.mubr.f32.gmra.mrb[0].mxu0 %v575
    %v886 = vpop.f32.mrb[0].mxu0
    %v887 = vadd.f32 0.0, %v886
    %v888 = vpop.f32.mrb[0].mxu0
    %889 = vmatprep.mubr.f32.mxu0 0.0
    %890 = vmatmul.mubr.f32.gmra.mrb[0].mxu0 %v578
    %v891 = vpop.f32.mrb[0].mxu0
    %v892 = vadd.f32 0.0, %v891
    %v893 = vpop.f32.mrb[0].mxu0
    %894 = vmatprep.mubr.f32.mxu0 0.0
    %895 = vmatmul.mubr.f32.gmra.mrb[0].mxu0 %v581
    %v896 = vpop.f32.mrb[0].mxu0
    %v897 = vadd.f32 0.0, %v896
    %v898 = vpop.f32.mrb[0].mxu0
    %899 = vmatprep.mubr.f32.mxu0 0.0
    %900 = vmatmul.mubr.f32.gmra.mrb[0].mxu0 %v584
    %v901 = vpop.f32.mrb[0].mxu0
    %v902 = vadd.f32 0.0, %v901
    %v903 = vpop.f32.mrb[0].mxu0
    %904 = vmatprep.mubr.f32.mxu0 0.0
    %905 = vmatmul.mubr.f32.gmra.mrb[0].mxu0 %v587
    %v906 = vpop.f32.mrb[0].mxu0
    %v907 = vadd.f32 0.0, %v906
    %v908 = vpop.f32.mrb[0].mxu0
    %909 = vmatprep.mubr.f32.mxu0 0.0
    %910 = vmatmul.mubr.f32.gmra.mrb[0].mxu0 %v590
    %v911 = vpop.f32.mrb[0].mxu0
    %v912 = vadd.f32 0.0, %v911
    %v913 = vpop.f32.mrb[0].mxu0
    %914 = vmatprep.mubr.f32.mxu0 0.0
    %915 = vmatmul.mubr.f32.gmra.mrb[0].mxu0 %v593
    %v916 = vpop.f32.mrb[0].mxu0
    %v917 = vadd.f32 0.0, %v916
    %v918 = vpop.f32.mrb[0].mxu0
    %919 = vmatprep.mubr.f32.mxu0 0.0
    %920 = vmatmul.mubr.f32.gmra.mrb[0].mxu0 %v596
    %v921 = vpop.f32.mrb[0].mxu0
    %v922 = vadd.f32 0.0, %v921
    %v923 = vpop.f32.mrb[0].mxu0
    %924 = vmatprep.mubr.f32.mxu0 0.0
    %925 = vmatmul.mubr.f32.gmra.mrb[0].mxu0 %v599
    %v926 = vpop.f32.mrb[0].mxu0
    %v927 = vadd.f32 0.0, %v926
    %v928 = vpop.f32.mrb[0].mxu0
    %929 = vmatprep.mubr.f32.mxu0 0.0
    %930 = vmatmul.mubr.f32.gmra.mrb[0].mxu0 %v602
    %v931 = vpop.f32.mrb[0].mxu0
    %v932 = vadd.f32 0.0, %v931
    %v933 = vpop.f32.mrb[0].mxu0
    %934 = vmatprep.mubr.f32.mxu0 0.0
    %935 = vmatmul.mubr.f32.gmra.mrb[0].mxu0 %v605
    %v936 = vpop.f32.mrb[0].mxu0
    %v937 = vadd.f32 0.0, %v936
    %v938 = vpop.f32.mrb[0].mxu0
    %939 = vmatprep.mubr.f32.mxu0 0.0
    %940 = vmatmul.mubr.f32.gmra.mrb[0].mxu0 %v608
    %v941 = vpop.f32.mrb[0].mxu0
    %v942 = vadd.f32 0.0, %v941
    %v943 = vpop.f32.mrb[0].mxu0
    %944 = vmatprep.mubr.f32.mxu0 0.0
    %945 = vmatmul.mubr.f32.gmra.mrb[0].mxu0 %v611
    %v946 = vpop.f32.mrb[0].mxu0
    %v947 = vadd.f32 0.0, %v946
    %v948 = vpop.f32.mrb[0].mxu0
    %949 = vmatprep.mubr.f32.mxu0 0.0
    %950 = vmatmul.mubr.f32.gmra.mrb[0].mxu0 %v614
    %v951 = vpop.f32.mrb[0].mxu0
    %v952 = vadd.f32 0.0, %v951
    %v953 = vpop.f32.mrb[0].mxu0
    %954 = vmatprep.mubr.f32.mxu0 0.0
    %955 = vmatmul.mubr.f32.gmra.mrb[0].mxu0 %v617
    %v956 = vpop.f32.mrb[0].mxu0
    %v957 = vadd.f32 0.0, %v956
    %v958 = vpop.f32.mrb[0].mxu0
    %959 = vmatprep.mubr.f32.mxu0 0.0
    %960 = vmatmul.mubr.f32.gmra.mrb[0].mxu0 %v620
    %v961 = vpop.f32.mrb[0].mxu0
    %v962 = vadd.f32 0.0, %v961
    %v963 = vpop.f32.mrb[0].mxu0
    %964 = vmatprep.mubr.f32.mxu0 0.0
    %965 = vmatmul.mubr.f32.gmra.mrb[0].mxu0 %v623
    %v966 = vpop.f32.mrb[0].mxu0
    %v967 = vadd.f32 0.0, %v966
    %v968 = vpop.f32.mrb[0].mxu0
    %969 = vmatprep.mubr.f32.mxu0 0.0
    %970 = vmatmul.mubr.f32.gmra.mrb[0].mxu0 %v626
    %v971 = vpop.f32.mrb[0].mxu0
    %v972 = vadd.f32 0.0, %v971
    %v973 = vpop.f32.mrb[0].mxu0
    %974 = vmatprep.mubr.f32.mxu0 0.0
    %975 = vmatmul.mubr.f32.gmra.mrb[0].mxu0 %v629
    %v976 = vpop.f32.mrb[0].mxu0
    %v977 = vadd.f32 0.0, %v976
    %v978 = vpop.f32.mrb[0].mxu0
    %979 = vmatprep.mubr.f32.mxu0 0.0
    %980 = vmatmul.mubr.f32.gmra.mrb[0].mxu0 %v632
    %v981 = vpop.f32.mrb[0].mxu0
    %v982 = vadd.f32 0.0, %v981
    %v983 = vpop.f32.mrb[0].mxu0
    %984 = vmatprep.mubr.f32.mxu0 0.0
    %985 = vmatmul.mubr.f32.gmra.mrb[0].mxu0 %v635
    %v986 = vpop.f32.mrb[0].mxu0
    %v987 = vadd.f32 0.0, %v986
    %v988 = vpop.f32.mrb[0].mxu0
    %989 = vmatprep.mubr.f32.mxu0 0.0
    %990 = vmatmul.mubr.f32.gmra.mrb[0].mxu0 %v638
    %v991 = vpop.f32.mrb[0].mxu0
    %v992 = vadd.f32 0.0, %v991
    %v993 = vpop.f32.mrb[0].mxu0
    %994 = vmatprep.mubr.f32.mxu0 0.0
    %995 = vmatmul.mubr.f32.gmra.mrb[0].mxu0 %v641
    %v996 = vpop.f32.mrb[0].mxu0
    %v997 = vadd.f32 0.0, %v996
    %v998 = vpop.f32.mrb[0].mxu0
    %999 = vmatprep.mubr.f32.mxu0 0.0
    %1000 = vmatmul.mubr.f32.gmra.mrb[0].mxu0 %v644
    %v1001 = vpop.f32.mrb[0].mxu0
    %v1002 = vadd.f32 0.0, %v1001
    %v1003 = vpop.f32.mrb[0].mxu0
    %1004 = vmatprep.mubr.f32.mxu0 0.0
    %1005 = vmatmul.mubr.f32.gmra.mrb[0].mxu0 %v647
    %v1006 = vpop.f32.mrb[0].mxu0
    %v1007 = vadd.f32 0.0, %v1006
    %v1008 = vpop.f32.mrb[0].mxu0
    %1009 = vmatprep.mubr.f32.mxu0 0.0
    %1010 = vmatmul.mubr.f32.gmra.mrb[0].mxu0 %v650
    %v1011 = vpop.f32.mrb[0].mxu0
    %v1012 = vadd.f32 0.0, %v1011
    %v1013 = vpop.f32.mrb[0].mxu0
    %1014 = vmatprep.mubr.f32.mxu0 0.0
    %1015 = vmatmul.mubr.f32.gmra.mrb[0].mxu0 %v653
    %v1016 = vpop.f32.mrb[0].mxu0
    %v1017 = vadd.f32 0.0, %v1016
    %v1018 = vpop.f32.mrb[0].mxu0
    %1019 = vmatprep.mubr.f32.mxu0 0.0
    %1020 = vmatmul.mubr.f32.gmra.mrb[0].mxu0 %v656
    %v1021 = vpop.f32.mrb[0].mxu0
    %v1022 = vadd.f32 0.0, %v1021
    %v1023 = vpop.f32.mrb[0].mxu0
    %1024 = vmatprep.mubr.f32.mxu0 0.0
    %1025 = vmatmul.mubr.f32.gmra.mrb[0].mxu0 %v659
    %v1026 = vpop.f32.mrb[0].mxu0
    %v1027 = vadd.f32 0.0, %v1026
    %v1028 = vpop.f32.mrb[0].mxu0
    %1029 = vmatprep.mubr.f32.mxu0 0.0
    %1030 = vmatmul.mubr.f32.gmra.mrb[0].mxu0 %v662
    %v1031 = vpop.f32.mrb[0].mxu0
    %v1032 = vadd.f32 0.0, %v1031
    %v1033 = vpop.f32.mrb[0].mxu0
    %1034 = vmatprep.mubr.f32.mxu0 0.0
    %1035 = vmatmul.mubr.f32.gmra.mrb[0].mxu0 %v665
    %v1036 = vpop.f32.mrb[0].mxu0
    %v1037 = vadd.f32 0.0, %v1036
    %v1038 = vpop.f32.mrb[0].mxu0
    %1039 = vmatprep.mubr.f32.mxu0 0.0
    %1040 = vmatmul.mubr.f32.gmra.mrb[0].mxu0 %v668
    %v1041 = vpop.f32.mrb[0].mxu0
    %v1042 = vadd.f32 0.0, %v1041
    %v1043 = vpop.f32.mrb[0].mxu0
    %1044 = vmatprep.mubr.f32.mxu0 0.0
    %1045 = vmatmul.mubr.f32.gmra.mrb[0].mxu0 %v671
    %v1046 = vpop.f32.mrb[0].mxu0
    %v1047 = vadd.f32 0.0, %v1046
    %v1048 = vpop.f32.mrb[0].mxu0
    %1049 = vmatprep.mubr.f32.mxu0 0.0
    %1050 = vmatmul.mubr.f32.gmra.mrb[0].mxu0 %v674
    %v1051 = vpop.f32.mrb[0].mxu0
    %v1052 = vadd.f32 0.0, %v1051
    %v1053 = vpop.f32.mrb[0].mxu0
    %1054 = vmatprep.mubr.f32.mxu0 0.0
    %1055 = vmatmul.mubr.f32.gmra.mrb[0].mxu0 %v677
    %v1056 = vpop.f32.mrb[0].mxu0
    %v1057 = vadd.f32 0.0, %v1056
    %v1058 = vpop.f32.mrb[0].mxu0
    %1059 = vmatprep.mubr.f32.mxu0 0.0
    %1060 = vmatmul.mubr.f32.gmra.mrb[0].mxu0 %v680
    %v1061 = vpop.f32.mrb[0].mxu0
    %v1062 = vadd.f32 0.0, %v1061
    %v1063 = vpop.f32.mrb[0].mxu0
    %1064 = vmatprep.mubr.f32.mxu0 0.0
    %1065 = vmatmul.mubr.f32.gmra.mrb[0].mxu0 %v683
    %v1066 = vpop.f32.mrb[0].mxu0
    %v1067 = vadd.f32 0.0, %v1066
    %v1068 = vpop.f32.mrb[0].mxu0
    %1069 = vmatprep.mubr.f32.mxu0 0.0
    %1070 = vmatmul.mubr.f32.gmra.mrb[0].mxu0 %v686
    %v1071 = vpop.f32.mrb[0].mxu0
    %v1072 = vadd.f32 0.0, %v1071
    %v1073 = vpop.f32.mrb[0].mxu0
    %1074 = vmatprep.mubr.f32.mxu0 0.0
    %1075 = vmatmul.mubr.f32.gmra.mrb[0].mxu0 %v689
    %v1076 = vpop.f32.mrb[0].mxu0
    %v1077 = vadd.f32 0.0, %v1076
    %v1078 = vpop.f32.mrb[0].mxu0
    %1079 = vdwg.mxu0
    %v1080 = vmax.f32 %v762, 0.0
    %v1081 = vmax.f32 %v767, 0.0
    %v1082 = vmax.f32 %v772, 0.0
    %v1083 = vmax.f32 %v777, 0.0
    %v1084 = vmax.f32 %v782, 0.0
    %v1085 = vmax.f32 %v787, 0.0
    %v1086 = vmax.f32 %v792, 0.0
    %v1087 = vmax.f32 %v797, 0.0
    %v1088 = vmax.f32 %v802, 0.0
    %v1089 = vmax.f32 %v807, 0.0
    %v1090 = vmax.f32 %v812, 0.0
    %v1091 = vmax.f32 %v817, 0.0
    %v1092 = vmax.f32 %v822, 0.0
    %v1093 = vmax.f32 %v827, 0.0
    %v1094 = vmax.f32 %v832, 0.0
    %v1095 = vmax.f32 %v837, 0.0
    %v1096 = vmax.f32 %v842, 0.0
    %v1097 = vmax.f32 %v847, 0.0
    %v1098 = vmax.f32 %v852, 0.0
    %v1099 = vmax.f32 %v857, 0.0
    %v1100 = vmax.f32 %v862, 0.0
    %v1101 = vmax.f32 %v867, 0.0
    %v1102 = vmax.f32 %v872, 0.0
    %v1103 = vmax.f32 %v877, 0.0
    %v1104 = vmax.f32 %v882, 0.0
    %v1105 = vmax.f32 %v887, 0.0
    %v1106 = vmax.f32 %v892, 0.0
    %v1107 = vmax.f32 %v897, 0.0
    %v1108 = vmax.f32 %v902, 0.0
    %v1109 = vmax.f32 %v907, 0.0
    %v1110 = vmax.f32 %v912, 0.0
    %v1111 = vmax.f32 %v917, 0.0
    %v1112 = vmax.f32 %v922, 0.0
    %v1113 = vmax.f32 %v927, 0.0
    %v1114 = vmax.f32 %v932, 0.0
    %v1115 = vmax.f32 %v937, 0.0
    %v1116 = vmax.f32 %v942, 0.0
    %v1117 = vmax.f32 %v947, 0.0
    %v1118 = vmax.f32 %v952, 0.0
    %v1119 = vmax.f32 %v957, 0.0
    %v1120 = vmax.f32 %v962, 0.0
    %v1121 = vmax.f32 %v967, 0.0
    %v1122 = vmax.f32 %v972, 0.0
    %v1123 = vmax.f32 %v977, 0.0
    %v1124 = vmax.f32 %v982, 0.0
    %v1125 = vmax.f32 %v987, 0.0
    %v1126 = vmax.f32 %v992, 0.0
    %v1127 = vmax.f32 %v997, 0.0
    %v1128 = vmax.f32 %v1002, 0.0
    %v1129 = vmax.f32 %v1007, 0.0
    %v1130 = vmax.f32 %v1012, 0.0
    %v1131 = vmax.f32 %v1017, 0.0
    %v1132 = vmax.f32 %v1022, 0.0
    %v1133 = vmax.f32 %v1027, 0.0
    %v1134 = vmax.f32 %v1032, 0.0
    %v1135 = vmax.f32 %v1037, 0.0
    %v1136 = vmax.f32 %v1042, 0.0
    %v1137 = vmax.f32 %v1047, 0.0
    %v1138 = vmax.f32 %v1052, 0.0
    %v1139 = vmax.f32 %v1057, 0.0
    %v1140 = vmax.f32 %v1062, 0.0
    %v1141 = vmax.f32 %v1067, 0.0
    %v1142 = vmax.f32 %v1072, 0.0
    %v1143 = vmax.f32 %v1077, 0.0
    %v1144 = vadd.f32 %v1080, %v1081
    %v1145 = vadd.f32 %v1144, %v1082
    %v1146 = vadd.f32 %v1145, %v1083
    %v1147 = vadd.f32 %v1146, %v1084
    %v1148 = vadd.f32 %v1147, %v1085
    %v1149 = vadd.f32 %v1148, %v1086
    %v1150 = vadd.f32 %v1149, %v1087
    %v1151 = vrot.slane %v1150, 4
    %v1152 = vadd.f32 %v1150, %v1151
    %v1153 = vrot.slane %v1152, 2
    %v1154 = vadd.f32 %v1152, %v1153
    %v1155 = vrot.slane %v1154, 1
    %v1156 = vadd.f32 %v1154, %v1155
    %v1157 = vadd.f32 %v1088, %v1089
    %v1158 = vadd.f32 %v1157, %v1090
    %v1159 = vadd.f32 %v1158, %v1091
    %v1160 = vadd.f32 %v1159, %v1092
    %v1161 = vadd.f32 %v1160, %v1093
    %v1162 = vadd.f32 %v1161, %v1094
    %v1163 = vadd.f32 %v1162, %v1095
    %v1164 = vrot.slane %v1163, 4
    %v1165 = vadd.f32 %v1163, %v1164
    %v1166 = vrot.slane %v1165, 2
    %v1167 = vadd.f32 %v1165, %v1166
    %v1168 = vrot.slane %v1167, 1
    %v1169 = vadd.f32 %v1167, %v1168
    %v1170 = vadd.f32 %v1096, %v1097
    %v1171 = vadd.f32 %v1170, %v1098
    %v1172 = vadd.f32 %v1171, %v1099
    %v1173 = vadd.f32 %v1172, %v1100
    %v1174 = vadd.f32 %v1173, %v1101
    %v1175 = vadd.f32 %v1174, %v1102
    %v1176 = vadd.f32 %v1175, %v1103
    %v1177 = vrot.slane %v1176, 4
    %v1178 = vadd.f32 %v1176, %v1177
    %v1179 = vrot.slane %v1178, 2
    %v1180 = vadd.f32 %v1178, %v1179
    %v1181 = vrot.slane %v1180, 1
    %v1182 = vadd.f32 %v1180, %v1181
    %v1183 = vadd.f32 %v1104, %v1105
    %v1184 = vadd.f32 %v1183, %v1106
    %v1185 = vadd.f32 %v1184, %v1107
    %v1186 = vadd.f32 %v1185, %v1108
    %v1187 = vadd.f32 %v1186, %v1109
    %v1188 = vadd.f32 %v1187, %v1110
    %v1189 = vadd.f32 %v1188, %v1111
    %v1190 = vrot.slane %v1189, 4
    %v1191 = vadd.f32 %v1189, %v1190
    %v1192 = vrot.slane %v1191, 2
    %v1193 = vadd.f32 %v1191, %v1192
    %v1194 = vrot.slane %v1193, 1
    %v1195 = vadd.f32 %v1193, %v1194
    %v1196 = vadd.f32 %v1112, %v1113
    %v1197 = vadd.f32 %v1196, %v1114
    %v1198 = vadd.f32 %v1197, %v1115
    %v1199 = vadd.f32 %v1198, %v1116
    %v1200 = vadd.f32 %v1199, %v1117
    %v1201 = vadd.f32 %v1200, %v1118
    %v1202 = vadd.f32 %v1201, %v1119
    %v1203 = vrot.slane %v1202, 4
    %v1204 = vadd.f32 %v1202, %v1203
    %v1205 = vrot.slane %v1204, 2
    %v1206 = vadd.f32 %v1204, %v1205
    %v1207 = vrot.slane %v1206, 1
    %v1208 = vadd.f32 %v1206, %v1207
    %v1209 = vadd.f32 %v1120, %v1121
    %v1210 = vadd.f32 %v1209, %v1122
    %v1211 = vadd.f32 %v1210, %v1123
    %v1212 = vadd.f32 %v1211, %v1124
    %v1213 = vadd.f32 %v1212, %v1125
    %v1214 = vadd.f32 %v1213, %v1126
    %v1215 = vadd.f32 %v1214, %v1127
    %v1216 = vrot.slane %v1215, 4
    %v1217 = vadd.f32 %v1215, %v1216
    %v1218 = vrot.slane %v1217, 2
    %v1219 = vadd.f32 %v1217, %v1218
    %v1220 = vrot.slane %v1219, 1
    %v1221 = vadd.f32 %v1219, %v1220
    %v1222 = vadd.f32 %v1128, %v1129
    %v1223 = vadd.f32 %v1222, %v1130
    %v1224 = vadd.f32 %v1223, %v1131
    %v1225 = vadd.f32 %v1224, %v1132
    %v1226 = vadd.f32 %v1225, %v1133
    %v1227 = vadd.f32 %v1226, %v1134
    %v1228 = vadd.f32 %v1227, %v1135
    %v1229 = vrot.slane %v1228, 4
    %v1230 = vadd.f32 %v1228, %v1229
    %v1231 = vrot.slane %v1230, 2
    %v1232 = vadd.f32 %v1230, %v1231
    %v1233 = vrot.slane %v1232, 1
    %v1234 = vadd.f32 %v1232, %v1233
    %v1235 = vadd.f32 %v1136, %v1137
    %v1236 = vadd.f32 %v1235, %v1138
    %v1237 = vadd.f32 %v1236, %v1139
    %v1238 = vadd.f32 %v1237, %v1140
    %v1239 = vadd.f32 %v1238, %v1141
    %v1240 = vadd.f32 %v1239, %v1142
    %v1241 = vadd.f32 %v1240, %v1143
    %v1242 = vrot.slane %v1241, 4
    %v1243 = vadd.f32 %v1241, %v1242
    %v1244 = vrot.slane %v1243, 2
    %v1245 = vadd.f32 %v1243, %v1244
    %v1246 = vrot.slane %v1245, 1
    %v1247 = vadd.f32 %v1245, %v1246
    %v1248 = vld [vmem:[%s2] sm:$0xff]
    %v1249 = vld [vmem:[%s2 + $0x8] sm:$0xff]
    %v1250 = vld [vmem:[%s2 + $0x10] sm:$0xff]
    %v1251 = vld [vmem:[%s2 + $0x18] sm:$0xff]
    %v1252 = vld [vmem:[%s2 + $0x20] sm:$0xff]
    %v1253 = vld [vmem:[%s2 + $0x28] sm:$0xff]
    %v1254 = vld [vmem:[%s2 + $0x30] sm:$0xff]
    %v1255 = vld [vmem:[%s2 + $0x38] sm:$0xff]
    %v1256 = vld [vmem:[%s2 + $0x40] sm:$0xff]
    %v1257 = vld [vmem:[%s2 + $0x48] sm:$0xff]
    %v1258 = vld [vmem:[%s2 + $0x50] sm:$0xff]
    %v1259 = vld [vmem:[%s2 + $0x58] sm:$0xff]
    %v1260 = vld [vmem:[%s2 + $0x60] sm:$0xff]
    %v1261 = vld [vmem:[%s2 + $0x68] sm:$0xff]
    %v1262 = vld [vmem:[%s2 + $0x70] sm:$0xff]
    %v1263 = vld [vmem:[%s2 + $0x78] sm:$0xff]
    %v1264 = vld [vmem:[%s2 + $0x80] sm:$0xff]
    %v1265 = vld [vmem:[%s2 + $0x88] sm:$0xff]
    %v1266 = vld [vmem:[%s2 + $0x90] sm:$0xff]
    %v1267 = vld [vmem:[%s2 + $0x98] sm:$0xff]
    %v1268 = vld [vmem:[%s2 + $0xa0] sm:$0xff]
    %v1269 = vld [vmem:[%s2 + $0xa8] sm:$0xff]
    %v1270 = vld [vmem:[%s2 + $0xb0] sm:$0xff]
    %v1271 = vld [vmem:[%s2 + $0xb8] sm:$0xff]
    %v1272 = vld [vmem:[%s2 + $0xc0] sm:$0xff]
    %v1273 = vld [vmem:[%s2 + $0xc8] sm:$0xff]
    %v1274 = vld [vmem:[%s2 + $0xd0] sm:$0xff]
    %v1275 = vld [vmem:[%s2 + $0xd8] sm:$0xff]
    %v1276 = vld [vmem:[%s2 + $0xe0] sm:$0xff]
    %v1277 = vld [vmem:[%s2 + $0xe8] sm:$0xff]
    %v1278 = vld [vmem:[%s2 + $0xf0] sm:$0xff]
    %v1279 = vld [vmem:[%s2 + $0xf8] sm:$0xff]
    %v1280 = vld [vmem:[%s2 + $0x100] sm:$0xff]
    %v1281 = vld [vmem:[%s2 + $0x108] sm:$0xff]
    %v1282 = vld [vmem:[%s2 + $0x110] sm:$0xff]
    %v1283 = vld [vmem:[%s2 + $0x118] sm:$0xff]
    %v1284 = vld [vmem:[%s2 + $0x120] sm:$0xff]
    %v1285 = vld [vmem:[%s2 + $0x128] sm:$0xff]
    %v1286 = vld [vmem:[%s2 + $0x130] sm:$0xff]
    %v1287 = vld [vmem:[%s2 + $0x138] sm:$0xff]
    %v1288 = vld [vmem:[%s2 + $0x140] sm:$0xff]
    %v1289 = vld [vmem:[%s2 + $0x148] sm:$0xff]
    %v1290 = vld [vmem:[%s2 + $0x150] sm:$0xff]
    %v1291 = vld [vmem:[%s2 + $0x158] sm:$0xff]
    %v1292 = vld [vmem:[%s2 + $0x160] sm:$0xff]
    %v1293 = vld [vmem:[%s2 + $0x168] sm:$0xff]
    %v1294 = vld [vmem:[%s2 + $0x170] sm:$0xff]
    %v1295 = vld [vmem:[%s2 + $0x178] sm:$0xff]
    %v1296 = vld [vmem:[%s2 + $0x180] sm:$0xff]
    %v1297 = vld [vmem:[%s2 + $0x188] sm:$0xff]
    %v1298 = vld [vmem:[%s2 + $0x190] sm:$0xff]
    %v1299 = vld [vmem:[%s2 + $0x198] sm:$0xff]
    %v1300 = vld [vmem:[%s2 + $0x1a0] sm:$0xff]
    %v1301 = vld [vmem:[%s2 + $0x1a8] sm:$0xff]
    %v1302 = vld [vmem:[%s2 + $0x1b0] sm:$0xff]
    %v1303 = vld [vmem:[%s2 + $0x1b8] sm:$0xff]
    %v1304 = vld [vmem:[%s2 + $0x1c0] sm:$0xff]
    %v1305 = vld [vmem:[%s2 + $0x1c8] sm:$0xff]
    %v1306 = vld [vmem:[%s2 + $0x1d0] sm:$0xff]
    %v1307 = vld [vmem:[%s2 + $0x1d8] sm:$0xff]
    %v1308 = vld [vmem:[%s2 + $0x1e0] sm:$0xff]
    %v1309 = vld [vmem:[%s2 + $0x1e8] sm:$0xff]
    %v1310 = vld [vmem:[%s2 + $0x1f0] sm:$0xff]
    %v1311 = vld [vmem:[%s2 + $0x1f8] sm:$0xff]
    %v1312 = vld [vmem:[%s3] sm:$0xf]
    %v1314 = vlaneseq
    %v1315 = vshrl.u32 %v1314, 7
    %v1316 = vsub.s32 0, %v1315
    %v1317 = vrot.slane %v1312, %v1316
    %v1318 = vlaneseq
    %v1319 = vshrl.u32 %v1318, 7
    %v1320 = vsub.s32 1, %v1319
    %v1321 = vrot.slane %v1312, %v1320
    %v1322 = vlaneseq
    %v1323 = vshrl.u32 %v1322, 7
    %v1324 = vsub.s32 2, %v1323
    %v1325 = vrot.slane %v1312, %v1324
    %v1326 = vlaneseq
    %v1327 = vshrl.u32 %v1326, 7
    %v1328 = vsub.s32 3, %v1327
    %v1329 = vrot.slane %v1312, %v1328
    %vm1342 = vcmask 1041409
    %v1343 = vsel %vm1342, %v1169, %v1156
    %vm1344 = vcmask 1042434
    %v1345 = vsel %vm1344, %v1182, %v1343
    %vm1346 = vcmask 1043459
    %v1347 = vsel %vm1346, %v1195, %v1345
    %vm1348 = vcmask 1044484
    %v1349 = vsel %vm1348, %v1208, %v1347
    %vm1350 = vcmask 1045509
    %v1351 = vsel %vm1350, %v1221, %v1349
    %vm1352 = vcmask 1046534
    %v1353 = vsel %vm1352, %v1234, %v1351
    %vm1354 = vcmask 1047559
    %v1355 = vsel %vm1354, %v1247, %v1353
    %1357 = vmatprep.subr.mxu0 %v1249
    %1358 = vmatpush1.msra.mxu0 %v1248
    %1359 = vmatprep.subr.mxu0 %v1253
    %1360 = vmatpush1.msra.mxu0 %v1252
    %1361 = vmatprep.subr.mxu0 %v1257
    %1362 = vmatpush1.msra.mxu0 %v1256
    %1363 = vmatprep.subr.mxu0 %v1261
    %1364 = vmatpush1.msra.mxu0 %v1260
    %1365 = vmatprep.subr.mxu0 %v1265
    %1366 = vmatpush1.msra.mxu0 %v1264
    %1367 = vmatprep.subr.mxu0 %v1269
    %1368 = vmatpush1.msra.mxu0 %v1268
    %1369 = vmatprep.subr.mxu0 %v1273
    %1370 = vmatpush1.msra.mxu0 %v1272
    %1371 = vmatprep.subr.mxu0 %v1277
    %1372 = vmatpush1.msra.mxu0 %v1276
    %1373 = vmatprep.subr.mxu0 %v1281
    %1374 = vmatpush1.msra.mxu0 %v1280
    %1375 = vmatprep.subr.mxu0 %v1285
    %1376 = vmatpush1.msra.mxu0 %v1284
    %1377 = vmatprep.subr.mxu0 %v1289
    %1378 = vmatpush1.msra.mxu0 %v1288
    %1379 = vmatprep.subr.mxu0 %v1293
    %1380 = vmatpush1.msra.mxu0 %v1292
    %1381 = vmatprep.subr.mxu0 %v1297
    %1382 = vmatpush1.msra.mxu0 %v1296
    %1383 = vmatprep.subr.mxu0 %v1301
    %1384 = vmatpush1.msra.mxu0 %v1300
    %1385 = vmatprep.subr.mxu0 %v1305
    %1386 = vmatpush1.msra.mxu0 %v1304
    %1387 = vmatprep.subr.mxu0 %v1309
    %1388 = vmatpush1.msra.mxu0 %v1308
    %1389 = vmatprep.subr.mxu0 0.0
    %1390 = vmatpush1.msra.mxu0 0.0
    %1391 = vmatprep.subr.mxu0 0.0
    %1392 = vmatpush1.msra.mxu0 0.0
    %1393 = vmatprep.subr.mxu0 0.0
    %1394 = vmatpush1.msra.mxu0 0.0
    %1395 = vmatprep.subr.mxu0 0.0
    %1396 = vmatpush1.msra.mxu0 0.0
    %1397 = vmatprep.subr.mxu0 0.0
    %1398 = vmatpush1.msra.mxu0 0.0
    %1399 = vmatprep.subr.mxu0 0.0
    %1400 = vmatpush1.msra.mxu0 0.0
    %1401 = vmatprep.subr.mxu0 0.0
    %1402 = vmatpush1.msra.mxu0 0.0
    %1403 = vmatprep.subr.mxu0 0.0
    %1404 = vmatpush1.msra.mxu0 0.0
    %1405 = vmatprep.subr.mxu0 0.0
    %1406 = vmatpush1.msra.mxu0 0.0
    %1407 = vmatprep.subr.mxu0 0.0
    %1408 = vmatpush1.msra.mxu0 0.0
    %1409 = vmatprep.subr.mxu0 0.0
    %1410 = vmatpush1.msra.mxu0 0.0
    %1411 = vmatprep.subr.mxu0 0.0
    %1412 = vmatpush1.msra.mxu0 0.0
    %1413 = vmatprep.subr.mxu0 0.0
    %1414 = vmatpush1.msra.mxu0 0.0
    %1415 = vmatprep.subr.mxu0 0.0
    %1416 = vmatpush1.msra.mxu0 0.0
    %1417 = vmatprep.subr.mxu0 0.0
    %1418 = vmatpush1.msra.mxu0 0.0
    %1419 = vmatprep.subr.mxu0 0.0
    %1420 = vmatpush1.msra.mxu0 0.0
    %1421 = vmatprep.mubr.f32.mxu0 0.0
    %1422 = vmatmul.mubr.f32.gmra.mrb[0].mxu0 %v1355
    %v1423 = vpop.f32.mrb[0].mxu0
    %v1424 = vadd.f32 %v1317, %v1423
    %v1425 = vpop.f32.mrb[0].mxu0
    %v1426 = vadd.f32 %v1321, %v1425
    %1427 = vdwg.mxu0
    %1428 = vmatprep.subr.mxu0 %v1251
    %1429 = vmatpush1.msra.mxu0 %v1250
    %1430 = vmatprep.subr.mxu0 %v1255
    %1431 = vmatpush1.msra.mxu0 %v1254
    %1432 = vmatprep.subr.mxu0 %v1259
    %1433 = vmatpush1.msra.mxu0 %v1258
    %1434 = vmatprep.subr.mxu0 %v1263
    %1435 = vmatpush1.msra.mxu0 %v1262
    %1436 = vmatprep.subr.mxu0 %v1267
    %1437 = vmatpush1.msra.mxu0 %v1266
    %1438 = vmatprep.subr.mxu0 %v1271
    %1439 = vmatpush1.msra.mxu0 %v1270
    %1440 = vmatprep.subr.mxu0 %v1275
    %1441 = vmatpush1.msra.mxu0 %v1274
    %1442 = vmatprep.subr.mxu0 %v1279
    %1443 = vmatpush1.msra.mxu0 %v1278
    %1444 = vmatprep.subr.mxu0 %v1283
    %1445 = vmatpush1.msra.mxu0 %v1282
    %1446 = vmatprep.subr.mxu0 %v1287
    %1447 = vmatpush1.msra.mxu0 %v1286
    %1448 = vmatprep.subr.mxu0 %v1291
    %1449 = vmatpush1.msra.mxu0 %v1290
    %1450 = vmatprep.subr.mxu0 %v1295
    %1451 = vmatpush1.msra.mxu0 %v1294
    %1452 = vmatprep.subr.mxu0 %v1299
    %1453 = vmatpush1.msra.mxu0 %v1298
    %1454 = vmatprep.subr.mxu0 %v1303
    %1455 = vmatpush1.msra.mxu0 %v1302
    %1456 = vmatprep.subr.mxu0 %v1307
    %1457 = vmatpush1.msra.mxu0 %v1306
    %1458 = vmatprep.subr.mxu0 %v1311
    %1459 = vmatpush1.msra.mxu0 %v1310
    %1460 = vmatprep.subr.mxu0 0.0
    %1461 = vmatpush1.msra.mxu0 0.0
    %1462 = vmatprep.subr.mxu0 0.0
    %1463 = vmatpush1.msra.mxu0 0.0
    %1464 = vmatprep.subr.mxu0 0.0
    %1465 = vmatpush1.msra.mxu0 0.0
    %1466 = vmatprep.subr.mxu0 0.0
    %1467 = vmatpush1.msra.mxu0 0.0
    %1468 = vmatprep.subr.mxu0 0.0
    %1469 = vmatpush1.msra.mxu0 0.0
    %1470 = vmatprep.subr.mxu0 0.0
    %1471 = vmatpush1.msra.mxu0 0.0
    %1472 = vmatprep.subr.mxu0 0.0
    %1473 = vmatpush1.msra.mxu0 0.0
    %1474 = vmatprep.subr.mxu0 0.0
    %1475 = vmatpush1.msra.mxu0 0.0
    %1476 = vmatprep.subr.mxu0 0.0
    %1477 = vmatpush1.msra.mxu0 0.0
    %1478 = vmatprep.subr.mxu0 0.0
    %1479 = vmatpush1.msra.mxu0 0.0
    %1480 = vmatprep.subr.mxu0 0.0
    %1481 = vmatpush1.msra.mxu0 0.0
    %1482 = vmatprep.subr.mxu0 0.0
    %1483 = vmatpush1.msra.mxu0 0.0
    %1484 = vmatprep.subr.mxu0 0.0
    %1485 = vmatpush1.msra.mxu0 0.0
    %1486 = vmatprep.subr.mxu0 0.0
    %1487 = vmatpush1.msra.mxu0 0.0
    %1488 = vmatprep.subr.mxu0 0.0
    %1489 = vmatpush1.msra.mxu0 0.0
    %1490 = vmatprep.subr.mxu0 0.0
    %1491 = vmatpush1.msra.mxu0 0.0
    %1492 = vmatprep.mubr.f32.mxu0 0.0
    %1493 = vmatmul.mubr.f32.gmra.mrb[0].mxu0 %v1355
    %v1494 = vpop.f32.mrb[0].mxu0
    %v1495 = vadd.f32 %v1325, %v1494
    %v1496 = vpop.f32.mrb[0].mxu0
    %v1497 = vadd.f32 %v1329, %v1496
    %1498 = vdwg.mxu0
    %v1499 = vmax.f32 %v1424, 0.0
    %v1500 = vmax.f32 %v1426, 0.0
    %v1501 = vmax.f32 %v1495, 0.0
    %v1502 = vmax.f32 %v1497, 0.0
    %s1503 = smul.u32 8, 64
    %s1504 = smul.u32 %s1503, 2
    %s1505 = sshll.u32 %s1504, 4
    %1506 = dma.done [#allocation4], %s1505
    %v1507 = vld [vmem:[#allocation2] sm:$0xff]
    %v1508 = vld [vmem:[#allocation2 + $0x8] sm:$0xff]
    %v1509 = vld [vmem:[#allocation2 + $0x10] sm:$0xff]
    %v1510 = vld [vmem:[#allocation2 + $0x18] sm:$0xff]
    %v1511 = vld [vmem:[#allocation2 + $0x20] sm:$0xff]
    %v1512 = vld [vmem:[#allocation2 + $0x28] sm:$0xff]
    %v1513 = vld [vmem:[#allocation2 + $0x30] sm:$0xff]
    %v1514 = vld [vmem:[#allocation2 + $0x38] sm:$0xff]
    %v1515 = vld [vmem:[#allocation2 + $0x40] sm:$0xff]
    %v1516 = vld [vmem:[#allocation2 + $0x48] sm:$0xff]
    %v1517 = vld [vmem:[#allocation2 + $0x50] sm:$0xff]
    %v1518 = vld [vmem:[#allocation2 + $0x58] sm:$0xff]
    %v1519 = vld [vmem:[#allocation2 + $0x60] sm:$0xff]
    %v1520 = vld [vmem:[#allocation2 + $0x68] sm:$0xff]
    %v1521 = vld [vmem:[#allocation2 + $0x70] sm:$0xff]
    %v1522 = vld [vmem:[#allocation2 + $0x78] sm:$0xff]
    %v1523 = vld [vmem:[#allocation2 + $0x80] sm:$0xff]
    %v1524 = vld [vmem:[#allocation2 + $0x88] sm:$0xff]
    %v1525 = vld [vmem:[#allocation2 + $0x90] sm:$0xff]
    %v1526 = vld [vmem:[#allocation2 + $0x98] sm:$0xff]
    %v1527 = vld [vmem:[#allocation2 + $0xa0] sm:$0xff]
    %v1528 = vld [vmem:[#allocation2 + $0xa8] sm:$0xff]
    %v1529 = vld [vmem:[#allocation2 + $0xb0] sm:$0xff]
    %v1530 = vld [vmem:[#allocation2 + $0xb8] sm:$0xff]
    %v1531 = vld [vmem:[#allocation2 + $0xc0] sm:$0xff]
    %v1532 = vld [vmem:[#allocation2 + $0xc8] sm:$0xff]
    %v1533 = vld [vmem:[#allocation2 + $0xd0] sm:$0xff]
    %v1534 = vld [vmem:[#allocation2 + $0xd8] sm:$0xff]
    %v1535 = vld [vmem:[#allocation2 + $0xe0] sm:$0xff]
    %v1536 = vld [vmem:[#allocation2 + $0xe8] sm:$0xff]
    %v1537 = vld [vmem:[#allocation2 + $0xf0] sm:$0xff]
    %v1538 = vld [vmem:[#allocation2 + $0xf8] sm:$0xff]
    %v1539 = vld [vmem:[#allocation2 + $0x100] sm:$0xff]
    %v1540 = vld [vmem:[#allocation2 + $0x108] sm:$0xff]
    %v1541 = vld [vmem:[#allocation2 + $0x110] sm:$0xff]
    %v1542 = vld [vmem:[#allocation2 + $0x118] sm:$0xff]
    %v1543 = vld [vmem:[#allocation2 + $0x120] sm:$0xff]
    %v1544 = vld [vmem:[#allocation2 + $0x128] sm:$0xff]
    %v1545 = vld [vmem:[#allocation2 + $0x130] sm:$0xff]
    %v1546 = vld [vmem:[#allocation2 + $0x138] sm:$0xff]
    %v1547 = vld [vmem:[#allocation2 + $0x140] sm:$0xff]
    %v1548 = vld [vmem:[#allocation2 + $0x148] sm:$0xff]
    %v1549 = vld [vmem:[#allocation2 + $0x150] sm:$0xff]
    %v1550 = vld [vmem:[#allocation2 + $0x158] sm:$0xff]
    %v1551 = vld [vmem:[#allocation2 + $0x160] sm:$0xff]
    %v1552 = vld [vmem:[#allocation2 + $0x168] sm:$0xff]
    %v1553 = vld [vmem:[#allocation2 + $0x170] sm:$0xff]
    %v1554 = vld [vmem:[#allocation2 + $0x178] sm:$0xff]
    %v1555 = vld [vmem:[#allocation2 + $0x180] sm:$0xff]
    %v1556 = vld [vmem:[#allocation2 + $0x188] sm:$0xff]
    %v1557 = vld [vmem:[#allocation2 + $0x190] sm:$0xff]
    %v1558 = vld [vmem:[#allocation2 + $0x198] sm:$0xff]
    %v1559 = vld [vmem:[#allocation2 + $0x1a0] sm:$0xff]
    %v1560 = vld [vmem:[#allocation2 + $0x1a8] sm:$0xff]
    %v1561 = vld [vmem:[#allocation2 + $0x1b0] sm:$0xff]
    %v1562 = vld [vmem:[#allocation2 + $0x1b8] sm:$0xff]
    %v1563 = vld [vmem:[#allocation2 + $0x1c0] sm:$0xff]
    %v1564 = vld [vmem:[#allocation2 + $0x1c8] sm:$0xff]
    %v1565 = vld [vmem:[#allocation2 + $0x1d0] sm:$0xff]
    %v1566 = vld [vmem:[#allocation2 + $0x1d8] sm:$0xff]
    %v1567 = vld [vmem:[#allocation2 + $0x1e0] sm:$0xff]
    %v1568 = vld [vmem:[#allocation2 + $0x1e8] sm:$0xff]
    %v1569 = vld [vmem:[#allocation2 + $0x1f0] sm:$0xff]
    %v1570 = vld [vmem:[#allocation2 + $0x1f8] sm:$0xff]
    %v1571 = vld [vmem:[#allocation2 + $0x200] sm:$0xff]
    %v1572 = vld [vmem:[#allocation2 + $0x208] sm:$0xff]
    %v1573 = vld [vmem:[#allocation2 + $0x210] sm:$0xff]
    %v1574 = vld [vmem:[#allocation2 + $0x218] sm:$0xff]
    %v1575 = vld [vmem:[#allocation2 + $0x220] sm:$0xff]
    %v1576 = vld [vmem:[#allocation2 + $0x228] sm:$0xff]
    %v1577 = vld [vmem:[#allocation2 + $0x230] sm:$0xff]
    %v1578 = vld [vmem:[#allocation2 + $0x238] sm:$0xff]
    %v1579 = vld [vmem:[#allocation2 + $0x240] sm:$0xff]
    %v1580 = vld [vmem:[#allocation2 + $0x248] sm:$0xff]
    %v1581 = vld [vmem:[#allocation2 + $0x250] sm:$0xff]
    %v1582 = vld [vmem:[#allocation2 + $0x258] sm:$0xff]
    %v1583 = vld [vmem:[#allocation2 + $0x260] sm:$0xff]
    %v1584 = vld [vmem:[#allocation2 + $0x268] sm:$0xff]
    %v1585 = vld [vmem:[#allocation2 + $0x270] sm:$0xff]
    %v1586 = vld [vmem:[#allocation2 + $0x278] sm:$0xff]
    %v1587 = vld [vmem:[#allocation2 + $0x280] sm:$0xff]
    %v1588 = vld [vmem:[#allocation2 + $0x288] sm:$0xff]
    %v1589 = vld [vmem:[#allocation2 + $0x290] sm:$0xff]
    %v1590 = vld [vmem:[#allocation2 + $0x298] sm:$0xff]
    %v1591 = vld [vmem:[#allocation2 + $0x2a0] sm:$0xff]
    %v1592 = vld [vmem:[#allocation2 + $0x2a8] sm:$0xff]
    %v1593 = vld [vmem:[#allocation2 + $0x2b0] sm:$0xff]
    %v1594 = vld [vmem:[#allocation2 + $0x2b8] sm:$0xff]
    %v1595 = vld [vmem:[#allocation2 + $0x2c0] sm:$0xff]
    %v1596 = vld [vmem:[#allocation2 + $0x2c8] sm:$0xff]
    %v1597 = vld [vmem:[#allocation2 + $0x2d0] sm:$0xff]
    %v1598 = vld [vmem:[#allocation2 + $0x2d8] sm:$0xff]
    %v1599 = vld [vmem:[#allocation2 + $0x2e0] sm:$0xff]
    %v1600 = vld [vmem:[#allocation2 + $0x2e8] sm:$0xff]
    %v1601 = vld [vmem:[#allocation2 + $0x2f0] sm:$0xff]
    %v1602 = vld [vmem:[#allocation2 + $0x2f8] sm:$0xff]
    %v1603 = vld [vmem:[#allocation2 + $0x300] sm:$0xff]
    %v1604 = vld [vmem:[#allocation2 + $0x308] sm:$0xff]
    %v1605 = vld [vmem:[#allocation2 + $0x310] sm:$0xff]
    %v1606 = vld [vmem:[#allocation2 + $0x318] sm:$0xff]
    %v1607 = vld [vmem:[#allocation2 + $0x320] sm:$0xff]
    %v1608 = vld [vmem:[#allocation2 + $0x328] sm:$0xff]
    %v1609 = vld [vmem:[#allocation2 + $0x330] sm:$0xff]
    %v1610 = vld [vmem:[#allocation2 + $0x338] sm:$0xff]
    %v1611 = vld [vmem:[#allocation2 + $0x340] sm:$0xff]
    %v1612 = vld [vmem:[#allocation2 + $0x348] sm:$0xff]
    %v1613 = vld [vmem:[#allocation2 + $0x350] sm:$0xff]
    %v1614 = vld [vmem:[#allocation2 + $0x358] sm:$0xff]
    %v1615 = vld [vmem:[#allocation2 + $0x360] sm:$0xff]
    %v1616 = vld [vmem:[#allocation2 + $0x368] sm:$0xff]
    %v1617 = vld [vmem:[#allocation2 + $0x370] sm:$0xff]
    %v1618 = vld [vmem:[#allocation2 + $0x378] sm:$0xff]
    %v1619 = vld [vmem:[#allocation2 + $0x380] sm:$0xff]
    %v1620 = vld [vmem:[#allocation2 + $0x388] sm:$0xff]
    %v1621 = vld [vmem:[#allocation2 + $0x390] sm:$0xff]
    %v1622 = vld [vmem:[#allocation2 + $0x398] sm:$0xff]
    %v1623 = vld [vmem:[#allocation2 + $0x3a0] sm:$0xff]
    %v1624 = vld [vmem:[#allocation2 + $0x3a8] sm:$0xff]
    %v1625 = vld [vmem:[#allocation2 + $0x3b0] sm:$0xff]
    %v1626 = vld [vmem:[#allocation2 + $0x3b8] sm:$0xff]
    %v1627 = vld [vmem:[#allocation2 + $0x3c0] sm:$0xff]
    %v1628 = vld [vmem:[#allocation2 + $0x3c8] sm:$0xff]
    %v1629 = vld [vmem:[#allocation2 + $0x3d0] sm:$0xff]
    %v1630 = vld [vmem:[#allocation2 + $0x3d8] sm:$0xff]
    %v1631 = vld [vmem:[#allocation2 + $0x3e0] sm:$0xff]
    %v1632 = vld [vmem:[#allocation2 + $0x3e8] sm:$0xff]
    %v1633 = vld [vmem:[#allocation2 + $0x3f0] sm:$0xff]
    %v1634 = vld [vmem:[#allocation2 + $0x3f8] sm:$0xff]
    %v1635 = vld [vmem:[%s4] sm:$0x3]
    %v1637 = vlaneseq
    %v1638 = vshrl.u32 %v1637, 7
    %v1639 = vsub.s32 0, %v1638
    %v1640 = vrot.slane %v1635, %v1639
    %v1641 = vlaneseq
    %v1642 = vshrl.u32 %v1641, 7
    %v1643 = vsub.s32 1, %v1642
    %v1644 = vrot.slane %v1635, %v1643
    %1647 = vmatprep.subr.mxu0 %v1508
    %1648 = vmatpush1.msra.mxu0 %v1507
    %1649 = vmatprep.subr.mxu0 %v1510
    %1650 = vmatpush1.msra.mxu0 %v1509
    %1651 = vmatprep.subr.mxu0 %v1512
    %1652 = vmatpush1.msra.mxu0 %v1511
    %1653 = vmatprep.subr.mxu0 %v1514
    %1654 = vmatpush1.msra.mxu0 %v1513
    %1655 = vmatprep.subr.mxu0 %v1516
    %1656 = vmatpush1.msra.mxu0 %v1515
    %1657 = vmatprep.subr.mxu0 %v1518
    %1658 = vmatpush1.msra.mxu0 %v1517
    %1659 = vmatprep.subr.mxu0 %v1520
    %1660 = vmatpush1.msra.mxu0 %v1519
    %1661 = vmatprep.subr.mxu0 %v1522
    %1662 = vmatpush1.msra.mxu0 %v1521
    %1663 = vmatprep.subr.mxu0 %v1524
    %1664 = vmatpush1.msra.mxu0 %v1523
    %1665 = vmatprep.subr.mxu0 %v1526
    %1666 = vmatpush1.msra.mxu0 %v1525
    %1667 = vmatprep.subr.mxu0 %v1528
    %1668 = vmatpush1.msra.mxu0 %v1527
    %1669 = vmatprep.subr.mxu0 %v1530
    %1670 = vmatpush1.msra.mxu0 %v1529
    %1671 = vmatprep.subr.mxu0 %v1532
    %1672 = vmatpush1.msra.mxu0 %v1531
    %1673 = vmatprep.subr.mxu0 %v1534
    %1674 = vmatpush1.msra.mxu0 %v1533
    %1675 = vmatprep.subr.mxu0 %v1536
    %1676 = vmatpush1.msra.mxu0 %v1535
    %1677 = vmatprep.subr.mxu0 %v1538
    %1678 = vmatpush1.msra.mxu0 %v1537
    %1679 = vmatprep.subr.mxu0 %v1540
    %1680 = vmatpush1.msra.mxu0 %v1539
    %1681 = vmatprep.subr.mxu0 %v1542
    %1682 = vmatpush1.msra.mxu0 %v1541
    %1683 = vmatprep.subr.mxu0 %v1544
    %1684 = vmatpush1.msra.mxu0 %v1543
    %1685 = vmatprep.subr.mxu0 %v1546
    %1686 = vmatpush1.msra.mxu0 %v1545
    %1687 = vmatprep.subr.mxu0 %v1548
    %1688 = vmatpush1.msra.mxu0 %v1547
    %1689 = vmatprep.subr.mxu0 %v1550
    %1690 = vmatpush1.msra.mxu0 %v1549
    %1691 = vmatprep.subr.mxu0 %v1552
    %1692 = vmatpush1.msra.mxu0 %v1551
    %1693 = vmatprep.subr.mxu0 %v1554
    %1694 = vmatpush1.msra.mxu0 %v1553
    %1695 = vmatprep.subr.mxu0 %v1556
    %1696 = vmatpush1.msra.mxu0 %v1555
    %1697 = vmatprep.subr.mxu0 %v1558
    %1698 = vmatpush1.msra.mxu0 %v1557
    %1699 = vmatprep.subr.mxu0 %v1560
    %1700 = vmatpush1.msra.mxu0 %v1559
    %1701 = vmatprep.subr.mxu0 %v1562
    %1702 = vmatpush1.msra.mxu0 %v1561
    %1703 = vmatprep.subr.mxu0 %v1564
    %1704 = vmatpush1.msra.mxu0 %v1563
    %1705 = vmatprep.subr.mxu0 %v1566
    %1706 = vmatpush1.msra.mxu0 %v1565
    %1707 = vmatprep.subr.mxu0 %v1568
    %1708 = vmatpush1.msra.mxu0 %v1567
    %1709 = vmatprep.subr.mxu0 %v1570
    %1710 = vmatpush1.msra.mxu0 %v1569
    %1711 = vmatprep.mubr.f32.mxu0 %v1500
    %1712 = vmatmul.mubr.f32.gmra.mrb[0].mxu0 %v1499
    %v1713 = vpop.f32.mrb[0].mxu0
    %v1714 = vadd.f32 %v1640, %v1713
    %v1715 = vpop.f32.mrb[0].mxu0
    %v1716 = vadd.f32 %v1644, %v1715
    %1717 = vdwg.mxu0
    %1718 = vmatprep.subr.mxu0 %v1572
    %1719 = vmatpush1.msra.mxu0 %v1571
    %1720 = vmatprep.subr.mxu0 %v1574
    %1721 = vmatpush1.msra.mxu0 %v1573
    %1722 = vmatprep.subr.mxu0 %v1576
    %1723 = vmatpush1.msra.mxu0 %v1575
    %1724 = vmatprep.subr.mxu0 %v1578
    %1725 = vmatpush1.msra.mxu0 %v1577
    %1726 = vmatprep.subr.mxu0 %v1580
    %1727 = vmatpush1.msra.mxu0 %v1579
    %1728 = vmatprep.subr.mxu0 %v1582
    %1729 = vmatpush1.msra.mxu0 %v1581
    %1730 = vmatprep.subr.mxu0 %v1584
    %1731 = vmatpush1.msra.mxu0 %v1583
    %1732 = vmatprep.subr.mxu0 %v1586
    %1733 = vmatpush1.msra.mxu0 %v1585
    %1734 = vmatprep.subr.mxu0 %v1588
    %1735 = vmatpush1.msra.mxu0 %v1587
    %1736 = vmatprep.subr.mxu0 %v1590
    %1737 = vmatpush1.msra.mxu0 %v1589
    %1738 = vmatprep.subr.mxu0 %v1592
    %1739 = vmatpush1.msra.mxu0 %v1591
    %1740 = vmatprep.subr.mxu0 %v1594
    %1741 = vmatpush1.msra.mxu0 %v1593
    %1742 = vmatprep.subr.mxu0 %v1596
    %1743 = vmatpush1.msra.mxu0 %v1595
    %1744 = vmatprep.subr.mxu0 %v1598
    %1745 = vmatpush1.msra.mxu0 %v1597
    %1746 = vmatprep.subr.mxu0 %v1600
    %1747 = vmatpush1.msra.mxu0 %v1599
    %1748 = vmatprep.subr.mxu0 %v1602
    %1749 = vmatpush1.msra.mxu0 %v1601
    %1750 = vmatprep.subr.mxu0 %v1604
    %1751 = vmatpush1.msra.mxu0 %v1603
    %1752 = vmatprep.subr.mxu0 %v1606
    %1753 = vmatpush1.msra.mxu0 %v1605
    %1754 = vmatprep.subr.mxu0 %v1608
    %1755 = vmatpush1.msra.mxu0 %v1607
    %1756 = vmatprep.subr.mxu0 %v1610
    %1757 = vmatpush1.msra.mxu0 %v1609
    %1758 = vmatprep.subr.mxu0 %v1612
    %1759 = vmatpush1.msra.mxu0 %v1611
    %1760 = vmatprep.subr.mxu0 %v1614
    %1761 = vmatpush1.msra.mxu0 %v1613
    %1762 = vmatprep.subr.mxu0 %v1616
    %1763 = vmatpush1.msra.mxu0 %v1615
    %1764 = vmatprep.subr.mxu0 %v1618
    %1765 = vmatpush1.msra.mxu0 %v1617
    %1766 = vmatprep.subr.mxu0 %v1620
    %1767 = vmatpush1.msra.mxu0 %v1619
    %1768 = vmatprep.subr.mxu0 %v1622
    %1769 = vmatpush1.msra.mxu0 %v1621
    %1770 = vmatprep.subr.mxu0 %v1624
    %1771 = vmatpush1.msra.mxu0 %v1623
    %1772 = vmatprep.subr.mxu0 %v1626
    %1773 = vmatpush1.msra.mxu0 %v1625
    %1774 = vmatprep.subr.mxu0 %v1628
    %1775 = vmatpush1.msra.mxu0 %v1627
    %1776 = vmatprep.subr.mxu0 %v1630
    %1777 = vmatpush1.msra.mxu0 %v1629
    %1778 = vmatprep.subr.mxu0 %v1632
    %1779 = vmatpush1.msra.mxu0 %v1631
    %1780 = vmatprep.subr.mxu0 %v1634
    %1781 = vmatpush1.msra.mxu0 %v1633
    %1782 = vmatprep.mubr.f32.mxu0 %v1502
    %1783 = vmatmul.mubr.f32.gmra.mrb[0].mxu0 %v1501
    %v1784 = vpop.f32.mrb[0].mxu0
    %v1785 = vadd.f32 %v1714, %v1784
    %v1786 = vpop.f32.mrb[0].mxu0
    %v1787 = vadd.f32 %v1716, %v1786
    %1788 = vdwg.mxu0
    %v1789 = vmax.f32 %v1785, 0.0
    %v1790 = vmax.f32 %v1787, 0.0
    %s1791 = smul.u32 256, 1
    %s1792 = sshll.u32 %s1791, 4
    %1793 = dma.done %s322, %s1792
    %v1794 = vld [vmem:[#allocation3] sm:$0xff]
    %v1795 = vld [vmem:[#allocation3 + $0x8] sm:$0xff]
    %v1796 = vld [vmem:[#allocation3 + $0x10] sm:$0xff]
    %v1797 = vld [vmem:[#allocation3 + $0x18] sm:$0xff]
    %v1798 = vld [vmem:[#allocation3 + $0x20] sm:$0xff]
    %v1799 = vld [vmem:[#allocation3 + $0x28] sm:$0xff]
    %v1800 = vld [vmem:[#allocation3 + $0x30] sm:$0xff]
    %v1801 = vld [vmem:[#allocation3 + $0x38] sm:$0xff]
    %v1802 = vld [vmem:[#allocation3 + $0x40] sm:$0xff]
    %v1803 = vld [vmem:[#allocation3 + $0x48] sm:$0xff]
    %v1804 = vld [vmem:[#allocation3 + $0x50] sm:$0xff]
    %v1805 = vld [vmem:[#allocation3 + $0x58] sm:$0xff]
    %v1806 = vld [vmem:[#allocation3 + $0x60] sm:$0xff]
    %v1807 = vld [vmem:[#allocation3 + $0x68] sm:$0xff]
    %v1808 = vld [vmem:[#allocation3 + $0x70] sm:$0xff]
    %v1809 = vld [vmem:[#allocation3 + $0x78] sm:$0xff]
    %v1810 = vld [vmem:[#allocation3 + $0x80] sm:$0xff]
    %v1811 = vld [vmem:[#allocation3 + $0x88] sm:$0xff]
    %v1812 = vld [vmem:[#allocation3 + $0x90] sm:$0xff]
    %v1813 = vld [vmem:[#allocation3 + $0x98] sm:$0xff]
    %v1814 = vld [vmem:[#allocation3 + $0xa0] sm:$0xff]
    %v1815 = vld [vmem:[#allocation3 + $0xa8] sm:$0xff]
    %v1816 = vld [vmem:[#allocation3 + $0xb0] sm:$0xff]
    %v1817 = vld [vmem:[#allocation3 + $0xb8] sm:$0xff]
    %v1818 = vld [vmem:[#allocation3 + $0xc0] sm:$0xff]
    %v1819 = vld [vmem:[#allocation3 + $0xc8] sm:$0xff]
    %v1820 = vld [vmem:[#allocation3 + $0xd0] sm:$0xff]
    %v1821 = vld [vmem:[#allocation3 + $0xd8] sm:$0xff]
    %v1822 = vld [vmem:[#allocation3 + $0xe0] sm:$0xff]
    %v1823 = vld [vmem:[#allocation3 + $0xe8] sm:$0xff]
    %v1824 = vld [vmem:[#allocation3 + $0xf0] sm:$0xff]
    %v1825 = vld [vmem:[#allocation3 + $0xf8] sm:$0xff]
    %v1826 = vld [vmem:[%s5] sm:$0x1]
    %v1828 = vlaneseq
    %v1829 = vshrl.u32 %v1828, 7
    %v1830 = vsub.s32 0, %v1829
    %v1831 = vrot.slane %v1826, %v1830
    %1833 = vmatprep.subr.mxu0 0.0
    %1834 = vmatpush1.msra.mxu0 %v1794
    %1835 = vmatprep.subr.mxu0 0.0
    %1836 = vmatpush1.msra.mxu0 %v1795
    %1837 = vmatprep.subr.mxu0 0.0
    %1838 = vmatpush1.msra.mxu0 %v1796
    %1839 = vmatprep.subr.mxu0 0.0
    %1840 = vmatpush1.msra.mxu0 %v1797
    %1841 = vmatprep.subr.mxu0 0.0
    %1842 = vmatpush1.msra.mxu0 %v1798
    %1843 = vmatprep.subr.mxu0 0.0
    %1844 = vmatpush1.msra.mxu0 %v1799
    %1845 = vmatprep.subr.mxu0 0.0
    %1846 = vmatpush1.msra.mxu0 %v1800
    %1847 = vmatprep.subr.mxu0 0.0
    %1848 = vmatpush1.msra.mxu0 %v1801
    %1849 = vmatprep.subr.mxu0 0.0
    %1850 = vmatpush1.msra.mxu0 %v1802
    %1851 = vmatprep.subr.mxu0 0.0
    %1852 = vmatpush1.msra.mxu0 %v1803
    %1853 = vmatprep.subr.mxu0 0.0
    %1854 = vmatpush1.msra.mxu0 %v1804
    %1855 = vmatprep.subr.mxu0 0.0
    %1856 = vmatpush1.msra.mxu0 %v1805
    %1857 = vmatprep.subr.mxu0 0.0
    %1858 = vmatpush1.msra.mxu0 %v1806
    %1859 = vmatprep.subr.mxu0 0.0
    %1860 = vmatpush1.msra.mxu0 %v1807
    %1861 = vmatprep.subr.mxu0 0.0
    %1862 = vmatpush1.msra.mxu0 %v1808
    %1863 = vmatprep.subr.mxu0 0.0
    %1864 = vmatpush1.msra.mxu0 %v1809
    %1865 = vmatprep.subr.mxu0 0.0
    %1866 = vmatpush1.msra.mxu0 %v1810
    %1867 = vmatprep.subr.mxu0 0.0
    %1868 = vmatpush1.msra.mxu0 %v1811
    %1869 = vmatprep.subr.mxu0 0.0
    %1870 = vmatpush1.msra.mxu0 %v1812
    %1871 = vmatprep.subr.mxu0 0.0
    %1872 = vmatpush1.msra.mxu0 %v1813
    %1873 = vmatprep.subr.mxu0 0.0
    %1874 = vmatpush1.msra.mxu0 %v1814
    %1875 = vmatprep.subr.mxu0 0.0
    %1876 = vmatpush1.msra.mxu0 %v1815
    %1877 = vmatprep.subr.mxu0 0.0
    %1878 = vmatpush1.msra.mxu0 %v1816
    %1879 = vmatprep.subr.mxu0 0.0
    %1880 = vmatpush1.msra.mxu0 %v1817
    %1881 = vmatprep.subr.mxu0 0.0
    %1882 = vmatpush1.msra.mxu0 %v1818
    %1883 = vmatprep.subr.mxu0 0.0
    %1884 = vmatpush1.msra.mxu0 %v1819
    %1885 = vmatprep.subr.mxu0 0.0
    %1886 = vmatpush1.msra.mxu0 %v1820
    %1887 = vmatprep.subr.mxu0 0.0
    %1888 = vmatpush1.msra.mxu0 %v1821
    %1889 = vmatprep.subr.mxu0 0.0
    %1890 = vmatpush1.msra.mxu0 %v1822
    %1891 = vmatprep.subr.mxu0 0.0
    %1892 = vmatpush1.msra.mxu0 %v1823
    %1893 = vmatprep.subr.mxu0 0.0
    %1894 = vmatpush1.msra.mxu0 %v1824
    %1895 = vmatprep.subr.mxu0 0.0
    %1896 = vmatpush1.msra.mxu0 %v1825
    %1897 = vmatprep.mubr.f32.mxu0 %v1790
    %1898 = vmatmul.mubr.f32.gmra.mrb[0].mxu0 %v1789
    %v1899 = vpop.f32.mrb[0].mxu0
    %v1900 = vadd.f32 %v1831, %v1899
    %v1901 = vpop.f32.mrb[0].mxu0
    %1902 = vdwg.mxu0
    %1903 = vst [vmem:[#allocation5] sm:$0xff] %v1900
    // Predicated region
    $region94: #{model_forward.1} parent=1 // pred_check
      _
    $region95: #{model_forward.1} parent=1 // pred_check_branch
      %1905 = sbr.rel (0) target = $region97
    $region96: #{model_forward.1} parent=1 // pred_region
      %s1907 = ssub.s32 128, 128
      %1908 = vsyncadd [#allocation6], %s1907
      %s1910 = sshll.u32 [#allocation5], 4
      %s1911 = int_to_ptr.vmem [resolvable:$true] %s1910
      %1913 = dma.vmem_to_hbm [thread:$0]  %s1911, 128, %s8, [#allocation6]
    $region97: #{model_forward.1} parent=1 // pred_fallthru
      _
    // Predicated region
    $region98: #{model_forward.1} parent=1 // pred_check
      _
    $region99: #{model_forward.1} parent=1 // pred_check_branch
      %1915 = sbr.rel (0) target = $region101
    $region100: #{model_forward.1} parent=1 // pred_region
      %1916 = dma.done [#allocation6], 128
    $region101: #{model_forward.1} parent=1 // pred_fallthru
      _
    %1917 = vsyncpa [#allocation6], 1
  %1918 = vsyncmov [#allocation4]
  %s1919 = vpop.sfrf %1918
  %p1920 = scmp.eq.s32.totalorder %s1919, 0
  %p1921 = pneg %p1920
  %1923 = shalt.err (%p1921)
  %s1924 = scalar_lea.sflag [#allocation4], 1
  %1925 = vsyncmov %s1924
  %s1926 = vpop.sfrf %1925
  %p1927 = scmp.eq.s32.totalorder %s1926, 0
  %p1928 = pneg %p1927
  %1930 = shalt.err (%p1928)

</llo_original>
